<compile_context>
chip_gen: v7x
topology: tpu7x:2x2x1
jax: 0.10.0
libtpu: 0.0.40
codegen_flags: <defaults>
</compile_context>

<pallas_src>
import functools

import jax
import jax.numpy as jnp
from jax.experimental import pallas as pl
from jax.experimental.pallas import tpu as pltpu

EPS = 1e-5  # nn.LayerNorm default


def transformer_kernel(x_ref, wqkv_ref, bqkv_ref, wo_ref, bo_ref,
                       g1_ref, beta1_ref, w1_ref, b1_ref, w2_ref, b2_ref,
                       g2_ref, beta2_ref, o_ref, *, num_heads, seq_len):
    """Single invocation: x_ref is the whole (N*L, E) token slab (batch-major rows)."""
    x = x_ref[...]                                   # (N*L, E) f32
    rows, E = x.shape
    L = seq_len
    N = rows // L
    dh = E // num_heads

    # ---- QKV projection (weights pre-transposed to (E, 3E), q-scale pre-folded) ----
    qkv = jnp.dot(x, wqkv_ref[...], preferred_element_type=jnp.float32) + bqkv_ref[...]
    q = qkv[:, :E]                                   # already scaled by 1/sqrt(dh)
    k = qkv[:, E:2 * E]
    v = qkv[:, 2 * E:]

    wo_t = wo_ref[...]                               # (E, E) pre-transposed

    # ---- Attention core: per-(batch, head) tiny tiles; out-proj folded per head ----
    per_batch = []
    for n in range(N):                               # static loop, N small
        r0 = n * L
        qn = q[r0:r0 + L]
        kn = k[r0:r0 + L]
        vn = v[r0:r0 + L]
        o_n = jnp.zeros((L, E), jnp.float32)
        for h in range(num_heads):                   # static loop
            c0 = h * dh
            qh = qn[:, c0:c0 + dh]
            kh = kn[:, c0:c0 + dh]
            vh = vn[:, c0:c0 + dh]
            # scores: contract last dim of both operands (no explicit transpose)
            s = jax.lax.dot_general(qh, kh, (((1,), (1,)), ((), ())),
                                    preferred_element_type=jnp.float32)   # (L, L)
            s = s - jnp.max(s, axis=-1, keepdims=True)
            p = jnp.exp(s)
            p = p * pl.reciprocal(jnp.sum(p, axis=-1, keepdims=True), approx=True)
            ctx = jnp.dot(p, vh, preferred_element_type=jnp.float32)      # (L, dh)
            # fold output projection for this head (removes the lane-axis concat)
            o_n = o_n + jnp.dot(ctx, wo_t[c0:c0 + dh, :],
                                preferred_element_type=jnp.float32)       # (L, E)
        per_batch.append(o_n)
    attn = jnp.concatenate(per_batch, axis=0) + bo_ref[...]               # (N*L, E)

    # dropout1: identity (inference)

    # ---- LayerNorm 1 (reference module has NO residual here) ----
    mu1 = jnp.mean(attn, axis=-1, keepdims=True)
    var1 = jnp.mean(jnp.square(attn - mu1), axis=-1, keepdims=True)
    y1 = (attn - mu1) * jax.lax.rsqrt(var1 + EPS) * g1_ref[...] + beta1_ref[...]

    # ---- MLP: Linear -> ReLU -> (Dropout=id) -> Linear (weights pre-transposed) ----
    h1 = jnp.dot(y1, w1_ref[...], preferred_element_type=jnp.float32) + b1_ref[...]
    h1 = jnp.maximum(h1, 0.0)
    h2 = jnp.dot(h1, w2_ref[...], preferred_element_type=jnp.float32) + b2_ref[...]

    # ---- Residual + LayerNorm 2 ----
    z = y1 + h2
    mu2 = jnp.mean(z, axis=-1, keepdims=True)
    var2 = jnp.mean(jnp.square(z - mu2), axis=-1, keepdims=True)
    y2 = (z - mu2) * jax.lax.rsqrt(var2 + EPS) * g2_ref[...] + beta2_ref[...]

    o_ref[...] = y2.astype(o_ref.dtype)


def simple_transformer(x_lne, params, num_heads):
    """x_lne: (L, N, E), PyTorch nn.MultiheadAttention default layout."""
    L, N, E = x_lne.shape
    H = params["w1"].shape[0]
    dh = E // num_heads
    scale = 1.0 / jnp.sqrt(jnp.float32(dh))

    # Batch-major (N*L, E) slab: per-batch token blocks are contiguous rows.
    # (At these shapes the transpose is a ~2 KB XLA op; negligible.)
    x = jnp.transpose(x_lne, (1, 0, 2)).reshape(N * L, E)

    # One-time wrapper-side weight prep: pre-transpose every weight matrix and fold
    # the 1/sqrt(dh) query scale into the q rows of the in-projection (W and b).
    qscale = jnp.concatenate([jnp.full((E,), scale, jnp.float32),
                              jnp.ones((2 * E,), jnp.float32)])
    wqkv_t = params["wqkv"].T * qscale[None, :]      # (E, 3E)
    bqkv = params["bqkv"] * qscale[None, :]          # (1, 3E)
    wo_t = params["wo"].T                            # (E, E)
    w1_t = params["w1"].T                            # (E, H)
    w2_t = params["w2"].T                            # (H, E)

    kernel = functools.partial(transformer_kernel, num_heads=num_heads, seq_len=L)

    def full(shape):
        return pl.BlockSpec(shape, lambda i: (0,) * len(shape))

    out = pl.pallas_call(
        kernel,
        out_shape=jax.ShapeDtypeStruct((N * L, E), jnp.float32),
        grid=(1,),                                   # collapsed grid: one dense slab
        in_specs=[
            full((N * L, E)),                        # x slab
            full((E, 3 * E)), full((1, 3 * E)),      # in_proj W^T (scaled), b (scaled)
            full((E, E)), full((1, E)),              # out_proj W^T, b
            full((1, E)), full((1, E)),              # LN1 gamma, beta
            full((E, H)), full((1, H)),              # mlp fc1 W^T, b
            full((H, E)), full((1, E)),              # mlp fc2 W^T, b
            full((1, E)), full((1, E)),              # LN2 gamma, beta
        ],
        out_specs=full((N * L, E)),
        compiler_params=pltpu.CompilerParams(dimension_semantics=("arbitrary",)),
    )(x, wqkv_t, bqkv, wo_t, params["bo"],
      params["g1"], params["beta1"], w1_t, params["b1"],
      w2_t, params["b2"], params["g2"], params["beta2"])

    # Free reshape + small transpose back to the PyTorch (L, N, E) layout.
    return jnp.transpose(out.reshape(N, L, E), (1, 0, 2))


def reference(x_lne, p, num_heads):
    """Pure-JAX reference reproducing the PyTorch forward (eval mode)."""
    L, N, E = x_lne.shape
    dh = E // num_heads
    x = jnp.transpose(x_lne, (1, 0, 2))
    qkv = x @ p["wqkv"].T + p["bqkv"][0]
    q, k, v = qkv[..., :E], qkv[..., E:2 * E], qkv[..., 2 * E:]
    q = q.reshape(N, L, num_heads, dh).transpose(0, 2, 1, 3) / jnp.sqrt(jnp.float32(dh))
    k = k.reshape(N, L, num_heads, dh).transpose(0, 2, 1, 3)
    v = v.reshape(N, L, num_heads, dh).transpose(0, 2, 1, 3)
    s = jnp.einsum("nhld,nhmd->nhlm", q, k)
    a = jnp.einsum("nhlm,nhmd->nhld", jax.nn.softmax(s, axis=-1), v)
    a = a.transpose(0, 2, 1, 3).reshape(N, L, E) @ p["wo"].T + p["bo"][0]

    def ln(z, g, b):
        mu = z.mean(-1, keepdims=True)
        var = ((z - mu) ** 2).mean(-1, keepdims=True)
        return (z - mu) / jnp.sqrt(var + EPS) * g[0] + b[0]

    y1 = ln(a, p["g1"], p["beta1"])
    h = jnp.maximum(y1 @ p["w1"].T + p["b1"][0], 0.0)
    h = h @ p["w2"].T + p["b2"][0]
    return jnp.transpose(ln(y1 + h, p["g2"], p["beta2"]), (1, 0, 2))


def make_params(key, input_dim, hidden_dim):
    E, H = input_dim, hidden_dim
    ks = jax.random.split(key, 8)
    s = 0.1
    return {
        "wqkv": s * jax.random.normal(ks[0], (3 * E, E), jnp.float32),
        "bqkv": s * jax.random.normal(ks[1], (1, 3 * E), jnp.float32),
        "wo":   s * jax.random.normal(ks[2], (E, E), jnp.float32),
        "bo":   s * jax.random.normal(ks[3], (1, E), jnp.float32),
        "g1":   jnp.ones((1, E), jnp.float32),
        "beta1": jnp.zeros((1, E), jnp.float32),
        "w1":   s * jax.random.normal(ks[4], (H, E), jnp.float32),
        "b1":   s * jax.random.normal(ks[5], (1, H), jnp.float32),
        "w2":   s * jax.random.normal(ks[6], (E, H), jnp.float32),
        "b2":   s * jax.random.normal(ks[7], (1, E), jnp.float32),
        "g2":   jnp.ones((1, E), jnp.float32),
        "beta2": jnp.zeros((1, E), jnp.float32),
    }


if __name__ == "__main__":
    input_dim, hidden_dim, num_heads = 32, 64, 4
    seq_len, batch = 8, 2

    key = jax.random.PRNGKey(0)
    k_x, k_p = jax.random.split(key)
    x = jax.random.normal(k_x, (seq_len, batch, input_dim), jnp.float32)  # (L, N, E)
    params = make_params(k_p, input_dim, hidden_dim)

    out = jax.block_until_ready(simple_transformer(x, params, num_heads))
    ref = reference(x, params, num_heads)

    assert out.shape == (seq_len, batch, input_dim)
    # Tolerance loosened from 1e-4 because the kernel uses the approximate EUP
    # reciprocal in the softmax (per perf guidance); structural bugs would be O(1).
    err = float(jnp.max(jnp.abs(out - ref)))
    assert err < 1e-2, f"mismatch vs JAX reference: max abs err {err}"

    # TODO(synk): dropout layers are identity here (inference mode); training-mode
    # dropout would need pltpu.prng_seed/prng_random_bits inside the kernel.
    print("KERNEL_OK")
</pallas_src>

<mosaic_0001>
module attributes {stable_mosaic.version = 11 : i64} {
  func.func @transformer_kernel(%arg0: i32, %arg1: memref<16x32xf32, #tpu.memory_space<vmem>>, %arg2: memref<32x96xf32, #tpu.memory_space<vmem>>, %arg3: memref<1x96xf32, #tpu.memory_space<vmem>>, %arg4: memref<32x32xf32, #tpu.memory_space<vmem>>, %arg5: memref<1x32xf32, #tpu.memory_space<vmem>>, %arg6: memref<1x32xf32, #tpu.memory_space<vmem>>, %arg7: memref<1x32xf32, #tpu.memory_space<vmem>>, %arg8: memref<32x64xf32, #tpu.memory_space<vmem>>, %arg9: memref<1x64xf32, #tpu.memory_space<vmem>>, %arg10: memref<64x32xf32, #tpu.memory_space<vmem>>, %arg11: memref<1x32xf32, #tpu.memory_space<vmem>>, %arg12: memref<1x32xf32, #tpu.memory_space<vmem>>, %arg13: memref<1x32xf32, #tpu.memory_space<vmem>>, %arg14: memref<16x32xf32, #tpu.memory_space<vmem>>) attributes {dimension_semantics = [#tpu.dimension_semantics<arbitrary>], iteration_bounds = array<i64: 1>, scalar_prefetch = 0 : i64, scratch_operands = 0 : i64, tpu.core_type = #tpu.core_type<tc>, window_params = [{pipeline_mode = #tpu.pipeline_mode<synchronous>, transform_indices = @transform_0, window_bounds = array<i64: 16, 32>}, {pipeline_mode = #tpu.pipeline_mode<synchronous>, transform_indices = @transform_1, window_bounds = array<i64: 32, 96>}, {pipeline_mode = #tpu.pipeline_mode<synchronous>, transform_indices = @transform_2, window_bounds = array<i64: 1, 96>}, {pipeline_mode = #tpu.pipeline_mode<synchronous>, transform_indices = @transform_3, window_bounds = array<i64: 32, 32>}, {pipeline_mode = #tpu.pipeline_mode<synchronous>, transform_indices = @transform_4, window_bounds = array<i64: 1, 32>}, {pipeline_mode = #tpu.pipeline_mode<synchronous>, transform_indices = @transform_5, window_bounds = array<i64: 1, 32>}, {pipeline_mode = #tpu.pipeline_mode<synchronous>, transform_indices = @transform_6, window_bounds = array<i64: 1, 32>}, {pipeline_mode = #tpu.pipeline_mode<synchronous>, transform_indices = @transform_7, window_bounds = array<i64: 32, 64>}, {pipeline_mode = #tpu.pipeline_mode<synchronous>, transform_indices = @transform_8, window_bounds = array<i64: 1, 64>}, {pipeline_mode = #tpu.pipeline_mode<synchronous>, transform_indices = @transform_9, window_bounds = array<i64: 64, 32>}, {pipeline_mode = #tpu.pipeline_mode<synchronous>, transform_indices = @transform_10, window_bounds = array<i64: 1, 32>}, {pipeline_mode = #tpu.pipeline_mode<synchronous>, transform_indices = @transform_11, window_bounds = array<i64: 1, 32>}, {pipeline_mode = #tpu.pipeline_mode<synchronous>, transform_indices = @transform_12, window_bounds = array<i64: 1, 32>}, {pipeline_mode = #tpu.pipeline_mode<synchronous>, transform_indices = @transform_13, window_bounds = array<i64: 16, 32>}]} {
    %c0 = arith.constant 0 : index
    %c0_0 = arith.constant 0 : index
    %0 = vector.load %arg1[%c0, %c0_0] : memref<16x32xf32, #tpu.memory_space<vmem>>, vector<16x32xf32>
    %c0_1 = arith.constant 0 : index
    %c0_2 = arith.constant 0 : index
    %1 = vector.load %arg2[%c0_1, %c0_2] : memref<32x96xf32, #tpu.memory_space<vmem>>, vector<32x96xf32>
    %cst = arith.constant dense<0.000000e+00> : vector<16x96xf32>
    %2 = tpu.matmul %0, %1, %cst {dimension_numbers = #tpu.dot_dimension_numbers<[1], [0], [0], [1], [0, 0, 1, 1], [], []>} : vector<16x32xf32>, vector<32x96xf32>, vector<16x96xf32> -> vector<16x96xf32>
    %c0_3 = arith.constant 0 : index
    %c0_4 = arith.constant 0 : index
    %3 = vector.load %arg3[%c0_3, %c0_4] : memref<1x96xf32, #tpu.memory_space<vmem>>, vector<1x96xf32>
    %4 = vector.broadcast %3 : vector<1x96xf32> to vector<16x96xf32>
    %5 = arith.addf %2, %4 : vector<16x96xf32>
    %6 = vector.extract_strided_slice %5 {offsets = [0, 0], sizes = [16, 32], strides = [1, 1]} : vector<16x96xf32> to vector<16x32xf32>
    %7 = vector.extract_strided_slice %5 {offsets = [0, 32], sizes = [16, 32], strides = [1, 1]} : vector<16x96xf32> to vector<16x32xf32>
    %8 = vector.extract_strided_slice %5 {offsets = [0, 64], sizes = [16, 32], strides = [1, 1]} : vector<16x96xf32> to vector<16x32xf32>
    %c0_5 = arith.constant 0 : index
    %c0_6 = arith.constant 0 : index
    %9 = vector.load %arg4[%c0_5, %c0_6] : memref<32x32xf32, #tpu.memory_space<vmem>>, vector<32x32xf32>
    %10 = vector.extract_strided_slice %6 {offsets = [0, 0], sizes = [8, 32], strides = [1, 1]} : vector<16x32xf32> to vector<8x32xf32>
    %11 = vector.extract_strided_slice %7 {offsets = [0, 0], sizes = [8, 32], strides = [1, 1]} : vector<16x32xf32> to vector<8x32xf32>
    %12 = vector.extract_strided_slice %8 {offsets = [0, 0], sizes = [8, 32], strides = [1, 1]} : vector<16x32xf32> to vector<8x32xf32>
    %cst_7 = arith.constant 0.000000e+00 : f32
    %13 = vector.broadcast %cst_7 : f32 to vector<8x32xf32>
    %14 = vector.extract_strided_slice %10 {offsets = [0, 0], sizes = [8, 8], strides = [1, 1]} : vector<8x32xf32> to vector<8x8xf32>
    %15 = vector.extract_strided_slice %11 {offsets = [0, 0], sizes = [8, 8], strides = [1, 1]} : vector<8x32xf32> to vector<8x8xf32>
    %16 = vector.extract_strided_slice %12 {offsets = [0, 0], sizes = [8, 8], strides = [1, 1]} : vector<8x32xf32> to vector<8x8xf32>
    %cst_8 = arith.constant dense<0.000000e+00> : vector<8x8xf32>
    %17 = tpu.matmul %14, %15, %cst_8 {dimension_numbers = #tpu.dot_dimension_numbers<[1], [1], [0], [0], [0, 0, 1, 0], [], []>} : vector<8x8xf32>, vector<8x8xf32>, vector<8x8xf32> -> vector<8x8xf32>
    %cst_9 = arith.constant dense<0xFF800000> : vector<8xf32>
    %18 = vector.multi_reduction <maximumf>, %17, %cst_9 [1] : vector<8x8xf32> to vector<8xf32>
    %19 = vector.shape_cast %18 : vector<8xf32> to vector<8x1xf32>
    %20 = vector.broadcast %19 : vector<8x1xf32> to vector<8x8xf32>
    %21 = arith.subf %17, %20 : vector<8x8xf32>
    %22 = math.exp %21 : vector<8x8xf32>
    %cst_10 = arith.constant dense<0.000000e+00> : vector<8xf32>
    %23 = vector.multi_reduction <add>, %22, %cst_10 [1] : vector<8x8xf32> to vector<8xf32>
    %24 = vector.shape_cast %23 : vector<8xf32> to vector<8x1xf32>
    %25 = tpu.reciprocal %24 {approx = true} : vector<8x1xf32> -> vector<8x1xf32>
    %26 = vector.broadcast %25 : vector<8x1xf32> to vector<8x8xf32>
    %27 = arith.mulf %22, %26 : vector<8x8xf32>
    %cst_11 = arith.constant dense<0.000000e+00> : vector<8x8xf32>
    %28 = tpu.matmul %27, %16, %cst_11 {dimension_numbers = #tpu.dot_dimension_numbers<[1], [0], [0], [1], [0, 0, 1, 1], [], []>} : vector<8x8xf32>, vector<8x8xf32>, vector<8x8xf32> -> vector<8x8xf32>
    %29 = vector.extract_strided_slice %9 {offsets = [0, 0], sizes = [8, 32], strides = [1, 1]} : vector<32x32xf32> to vector<8x32xf32>
    %cst_12 = arith.constant dense<0.000000e+00> : vector<8x32xf32>
    %30 = tpu.matmul %28, %29, %cst_12 {dimension_numbers = #tpu.dot_dimension_numbers<[1], [0], [0], [1], [0, 0, 1, 1], [], []>} : vector<8x8xf32>, vector<8x32xf32>, vector<8x32xf32> -> vector<8x32xf32>
    %31 = arith.addf %13, %30 : vector<8x32xf32>
    %32 = vector.extract_strided_slice %10 {offsets = [0, 8], sizes = [8, 8], strides = [1, 1]} : vector<8x32xf32> to vector<8x8xf32>
    %33 = vector.extract_strided_slice %11 {offsets = [0, 8], sizes = [8, 8], strides = [1, 1]} : vector<8x32xf32> to vector<8x8xf32>
    %34 = vector.extract_strided_slice %12 {offsets = [0, 8], sizes = [8, 8], strides = [1, 1]} : vector<8x32xf32> to vector<8x8xf32>
    %cst_13 = arith.constant dense<0.000000e+00> : vector<8x8xf32>
    %35 = tpu.matmul %32, %33, %cst_13 {dimension_numbers = #tpu.dot_dimension_numbers<[1], [1], [0], [0], [0, 0, 1, 0], [], []>} : vector<8x8xf32>, vector<8x8xf32>, vector<8x8xf32> -> vector<8x8xf32>
    %cst_14 = arith.constant dense<0xFF800000> : vector<8xf32>
    %36 = vector.multi_reduction <maximumf>, %35, %cst_14 [1] : vector<8x8xf32> to vector<8xf32>
    %37 = vector.shape_cast %36 : vector<8xf32> to vector<8x1xf32>
    %38 = vector.broadcast %37 : vector<8x1xf32> to vector<8x8xf32>
    %39 = arith.subf %35, %38 : vector<8x8xf32>
    %40 = math.exp %39 : vector<8x8xf32>
    %cst_15 = arith.constant dense<0.000000e+00> : vector<8xf32>
    %41 = vector.multi_reduction <add>, %40, %cst_15 [1] : vector<8x8xf32> to vector<8xf32>
    %42 = vector.shape_cast %41 : vector<8xf32> to vector<8x1xf32>
    %43 = tpu.reciprocal %42 {approx = true} : vector<8x1xf32> -> vector<8x1xf32>
    %44 = vector.broadcast %43 : vector<8x1xf32> to vector<8x8xf32>
    %45 = arith.mulf %40, %44 : vector<8x8xf32>
    %cst_16 = arith.constant dense<0.000000e+00> : vector<8x8xf32>
    %46 = tpu.matmul %45, %34, %cst_16 {dimension_numbers = #tpu.dot_dimension_numbers<[1], [0], [0], [1], [0, 0, 1, 1], [], []>} : vector<8x8xf32>, vector<8x8xf32>, vector<8x8xf32> -> vector<8x8xf32>
    %47 = vector.extract_strided_slice %9 {offsets = [8, 0], sizes = [8, 32], strides = [1, 1]} : vector<32x32xf32> to vector<8x32xf32>
    %cst_17 = arith.constant dense<0.000000e+00> : vector<8x32xf32>
    %48 = tpu.matmul %46, %47, %cst_17 {dimension_numbers = #tpu.dot_dimension_numbers<[1], [0], [0], [1], [0, 0, 1, 1], [], []>} : vector<8x8xf32>, vector<8x32xf32>, vector<8x32xf32> -> vector<8x32xf32>
    %49 = arith.addf %31, %48 : vector<8x32xf32>
    %50 = vector.extract_strided_slice %10 {offsets = [0, 16], sizes = [8, 8], strides = [1, 1]} : vector<8x32xf32> to vector<8x8xf32>
    %51 = vector.extract_strided_slice %11 {offsets = [0, 16], sizes = [8, 8], strides = [1, 1]} : vector<8x32xf32> to vector<8x8xf32>
    %52 = vector.extract_strided_slice %12 {offsets = [0, 16], sizes = [8, 8], strides = [1, 1]} : vector<8x32xf32> to vector<8x8xf32>
    %cst_18 = arith.constant dense<0.000000e+00> : vector<8x8xf32>
    %53 = tpu.matmul %50, %51, %cst_18 {dimension_numbers = #tpu.dot_dimension_numbers<[1], [1], [0], [0], [0, 0, 1, 0], [], []>} : vector<8x8xf32>, vector<8x8xf32>, vector<8x8xf32> -> vector<8x8xf32>
    %cst_19 = arith.constant dense<0xFF800000> : vector<8xf32>
    %54 = vector.multi_reduction <maximumf>, %53, %cst_19 [1] : vector<8x8xf32> to vector<8xf32>
    %55 = vector.shape_cast %54 : vector<8xf32> to vector<8x1xf32>
    %56 = vector.broadcast %55 : vector<8x1xf32> to vector<8x8xf32>
    %57 = arith.subf %53, %56 : vector<8x8xf32>
    %58 = math.exp %57 : vector<8x8xf32>
    %cst_20 = arith.constant dense<0.000000e+00> : vector<8xf32>
    %59 = vector.multi_reduction <add>, %58, %cst_20 [1] : vector<8x8xf32> to vector<8xf32>
    %60 = vector.shape_cast %59 : vector<8xf32> to vector<8x1xf32>
    %61 = tpu.reciprocal %60 {approx = true} : vector<8x1xf32> -> vector<8x1xf32>
    %62 = vector.broadcast %61 : vector<8x1xf32> to vector<8x8xf32>
    %63 = arith.mulf %58, %62 : vector<8x8xf32>
    %cst_21 = arith.constant dense<0.000000e+00> : vector<8x8xf32>
    %64 = tpu.matmul %63, %52, %cst_21 {dimension_numbers = #tpu.dot_dimension_numbers<[1], [0], [0], [1], [0, 0, 1, 1], [], []>} : vector<8x8xf32>, vector<8x8xf32>, vector<8x8xf32> -> vector<8x8xf32>
    %65 = vector.extract_strided_slice %9 {offsets = [16, 0], sizes = [8, 32], strides = [1, 1]} : vector<32x32xf32> to vector<8x32xf32>
    %cst_22 = arith.constant dense<0.000000e+00> : vector<8x32xf32>
    %66 = tpu.matmul %64, %65, %cst_22 {dimension_numbers = #tpu.dot_dimension_numbers<[1], [0], [0], [1], [0, 0, 1, 1], [], []>} : vector<8x8xf32>, vector<8x32xf32>, vector<8x32xf32> -> vector<8x32xf32>
    %67 = arith.addf %49, %66 : vector<8x32xf32>
    %68 = vector.extract_strided_slice %10 {offsets = [0, 24], sizes = [8, 8], strides = [1, 1]} : vector<8x32xf32> to vector<8x8xf32>
    %69 = vector.extract_strided_slice %11 {offsets = [0, 24], sizes = [8, 8], strides = [1, 1]} : vector<8x32xf32> to vector<8x8xf32>
    %70 = vector.extract_strided_slice %12 {offsets = [0, 24], sizes = [8, 8], strides = [1, 1]} : vector<8x32xf32> to vector<8x8xf32>
    %cst_23 = arith.constant dense<0.000000e+00> : vector<8x8xf32>
    %71 = tpu.matmul %68, %69, %cst_23 {dimension_numbers = #tpu.dot_dimension_numbers<[1], [1], [0], [0], [0, 0, 1, 0], [], []>} : vector<8x8xf32>, vector<8x8xf32>, vector<8x8xf32> -> vector<8x8xf32>
    %cst_24 = arith.constant dense<0xFF800000> : vector<8xf32>
    %72 = vector.multi_reduction <maximumf>, %71, %cst_24 [1] : vector<8x8xf32> to vector<8xf32>
    %73 = vector.shape_cast %72 : vector<8xf32> to vector<8x1xf32>
    %74 = vector.broadcast %73 : vector<8x1xf32> to vector<8x8xf32>
    %75 = arith.subf %71, %74 : vector<8x8xf32>
    %76 = math.exp %75 : vector<8x8xf32>
    %cst_25 = arith.constant dense<0.000000e+00> : vector<8xf32>
    %77 = vector.multi_reduction <add>, %76, %cst_25 [1] : vector<8x8xf32> to vector<8xf32>
    %78 = vector.shape_cast %77 : vector<8xf32> to vector<8x1xf32>
    %79 = tpu.reciprocal %78 {approx = true} : vector<8x1xf32> -> vector<8x1xf32>
    %80 = vector.broadcast %79 : vector<8x1xf32> to vector<8x8xf32>
    %81 = arith.mulf %76, %80 : vector<8x8xf32>
    %cst_26 = arith.constant dense<0.000000e+00> : vector<8x8xf32>
    %82 = tpu.matmul %81, %70, %cst_26 {dimension_numbers = #tpu.dot_dimension_numbers<[1], [0], [0], [1], [0, 0, 1, 1], [], []>} : vector<8x8xf32>, vector<8x8xf32>, vector<8x8xf32> -> vector<8x8xf32>
    %83 = vector.extract_strided_slice %9 {offsets = [24, 0], sizes = [8, 32], strides = [1, 1]} : vector<32x32xf32> to vector<8x32xf32>
    %cst_27 = arith.constant dense<0.000000e+00> : vector<8x32xf32>
    %84 = tpu.matmul %82, %83, %cst_27 {dimension_numbers = #tpu.dot_dimension_numbers<[1], [0], [0], [1], [0, 0, 1, 1], [], []>} : vector<8x8xf32>, vector<8x32xf32>, vector<8x32xf32> -> vector<8x32xf32>
    %85 = arith.addf %67, %84 : vector<8x32xf32>
    %86 = vector.extract_strided_slice %6 {offsets = [8, 0], sizes = [8, 32], strides = [1, 1]} : vector<16x32xf32> to vector<8x32xf32>
    %87 = vector.extract_strided_slice %7 {offsets = [8, 0], sizes = [8, 32], strides = [1, 1]} : vector<16x32xf32> to vector<8x32xf32>
    %88 = vector.extract_strided_slice %8 {offsets = [8, 0], sizes = [8, 32], strides = [1, 1]} : vector<16x32xf32> to vector<8x32xf32>
    %cst_28 = arith.constant 0.000000e+00 : f32
    %89 = vector.broadcast %cst_28 : f32 to vector<8x32xf32>
    %90 = vector.extract_strided_slice %86 {offsets = [0, 0], sizes = [8, 8], strides = [1, 1]} : vector<8x32xf32> to vector<8x8xf32>
    %91 = vector.extract_strided_slice %87 {offsets = [0, 0], sizes = [8, 8], strides = [1, 1]} : vector<8x32xf32> to vector<8x8xf32>
    %92 = vector.extract_strided_slice %88 {offsets = [0, 0], sizes = [8, 8], strides = [1, 1]} : vector<8x32xf32> to vector<8x8xf32>
    %cst_29 = arith.constant dense<0.000000e+00> : vector<8x8xf32>
    %93 = tpu.matmul %90, %91, %cst_29 {dimension_numbers = #tpu.dot_dimension_numbers<[1], [1], [0], [0], [0, 0, 1, 0], [], []>} : vector<8x8xf32>, vector<8x8xf32>, vector<8x8xf32> -> vector<8x8xf32>
    %cst_30 = arith.constant dense<0xFF800000> : vector<8xf32>
    %94 = vector.multi_reduction <maximumf>, %93, %cst_30 [1] : vector<8x8xf32> to vector<8xf32>
    %95 = vector.shape_cast %94 : vector<8xf32> to vector<8x1xf32>
    %96 = vector.broadcast %95 : vector<8x1xf32> to vector<8x8xf32>
    %97 = arith.subf %93, %96 : vector<8x8xf32>
    %98 = math.exp %97 : vector<8x8xf32>
    %cst_31 = arith.constant dense<0.000000e+00> : vector<8xf32>
    %99 = vector.multi_reduction <add>, %98, %cst_31 [1] : vector<8x8xf32> to vector<8xf32>
    %100 = vector.shape_cast %99 : vector<8xf32> to vector<8x1xf32>
    %101 = tpu.reciprocal %100 {approx = true} : vector<8x1xf32> -> vector<8x1xf32>
    %102 = vector.broadcast %101 : vector<8x1xf32> to vector<8x8xf32>
    %103 = arith.mulf %98, %102 : vector<8x8xf32>
    %cst_32 = arith.constant dense<0.000000e+00> : vector<8x8xf32>
    %104 = tpu.matmul %103, %92, %cst_32 {dimension_numbers = #tpu.dot_dimension_numbers<[1], [0], [0], [1], [0, 0, 1, 1], [], []>} : vector<8x8xf32>, vector<8x8xf32>, vector<8x8xf32> -> vector<8x8xf32>
    %105 = vector.extract_strided_slice %9 {offsets = [0, 0], sizes = [8, 32], strides = [1, 1]} : vector<32x32xf32> to vector<8x32xf32>
    %cst_33 = arith.constant dense<0.000000e+00> : vector<8x32xf32>
    %106 = tpu.matmul %104, %105, %cst_33 {dimension_numbers = #tpu.dot_dimension_numbers<[1], [0], [0], [1], [0, 0, 1, 1], [], []>} : vector<8x8xf32>, vector<8x32xf32>, vector<8x32xf32> -> vector<8x32xf32>
    %107 = arith.addf %89, %106 : vector<8x32xf32>
    %108 = vector.extract_strided_slice %86 {offsets = [0, 8], sizes = [8, 8], strides = [1, 1]} : vector<8x32xf32> to vector<8x8xf32>
    %109 = vector.extract_strided_slice %87 {offsets = [0, 8], sizes = [8, 8], strides = [1, 1]} : vector<8x32xf32> to vector<8x8xf32>
    %110 = vector.extract_strided_slice %88 {offsets = [0, 8], sizes = [8, 8], strides = [1, 1]} : vector<8x32xf32> to vector<8x8xf32>
    %cst_34 = arith.constant dense<0.000000e+00> : vector<8x8xf32>
    %111 = tpu.matmul %108, %109, %cst_34 {dimension_numbers = #tpu.dot_dimension_numbers<[1], [1], [0], [0], [0, 0, 1, 0], [], []>} : vector<8x8xf32>, vector<8x8xf32>, vector<8x8xf32> -> vector<8x8xf32>
    %cst_35 = arith.constant dense<0xFF800000> : vector<8xf32>
    %112 = vector.multi_reduction <maximumf>, %111, %cst_35 [1] : vector<8x8xf32> to vector<8xf32>
    %113 = vector.shape_cast %112 : vector<8xf32> to vector<8x1xf32>
    %114 = vector.broadcast %113 : vector<8x1xf32> to vector<8x8xf32>
    %115 = arith.subf %111, %114 : vector<8x8xf32>
    %116 = math.exp %115 : vector<8x8xf32>
    %cst_36 = arith.constant dense<0.000000e+00> : vector<8xf32>
    %117 = vector.multi_reduction <add>, %116, %cst_36 [1] : vector<8x8xf32> to vector<8xf32>
    %118 = vector.shape_cast %117 : vector<8xf32> to vector<8x1xf32>
    %119 = tpu.reciprocal %118 {approx = true} : vector<8x1xf32> -> vector<8x1xf32>
    %120 = vector.broadcast %119 : vector<8x1xf32> to vector<8x8xf32>
    %121 = arith.mulf %116, %120 : vector<8x8xf32>
    %cst_37 = arith.constant dense<0.000000e+00> : vector<8x8xf32>
    %122 = tpu.matmul %121, %110, %cst_37 {dimension_numbers = #tpu.dot_dimension_numbers<[1], [0], [0], [1], [0, 0, 1, 1], [], []>} : vector<8x8xf32>, vector<8x8xf32>, vector<8x8xf32> -> vector<8x8xf32>
    %123 = vector.extract_strided_slice %9 {offsets = [8, 0], sizes = [8, 32], strides = [1, 1]} : vector<32x32xf32> to vector<8x32xf32>
    %cst_38 = arith.constant dense<0.000000e+00> : vector<8x32xf32>
    %124 = tpu.matmul %122, %123, %cst_38 {dimension_numbers = #tpu.dot_dimension_numbers<[1], [0], [0], [1], [0, 0, 1, 1], [], []>} : vector<8x8xf32>, vector<8x32xf32>, vector<8x32xf32> -> vector<8x32xf32>
    %125 = arith.addf %107, %124 : vector<8x32xf32>
    %126 = vector.extract_strided_slice %86 {offsets = [0, 16], sizes = [8, 8], strides = [1, 1]} : vector<8x32xf32> to vector<8x8xf32>
    %127 = vector.extract_strided_slice %87 {offsets = [0, 16], sizes = [8, 8], strides = [1, 1]} : vector<8x32xf32> to vector<8x8xf32>
    %128 = vector.extract_strided_slice %88 {offsets = [0, 16], sizes = [8, 8], strides = [1, 1]} : vector<8x32xf32> to vector<8x8xf32>
    %cst_39 = arith.constant dense<0.000000e+00> : vector<8x8xf32>
    %129 = tpu.matmul %126, %127, %cst_39 {dimension_numbers = #tpu.dot_dimension_numbers<[1], [1], [0], [0], [0, 0, 1, 0], [], []>} : vector<8x8xf32>, vector<8x8xf32>, vector<8x8xf32> -> vector<8x8xf32>
    %cst_40 = arith.constant dense<0xFF800000> : vector<8xf32>
    %130 = vector.multi_reduction <maximumf>, %129, %cst_40 [1] : vector<8x8xf32> to vector<8xf32>
    %131 = vector.shape_cast %130 : vector<8xf32> to vector<8x1xf32>
    %132 = vector.broadcast %131 : vector<8x1xf32> to vector<8x8xf32>
    %133 = arith.subf %129, %132 : vector<8x8xf32>
    %134 = math.exp %133 : vector<8x8xf32>
    %cst_41 = arith.constant dense<0.000000e+00> : vector<8xf32>
    %135 = vector.multi_reduction <add>, %134, %cst_41 [1] : vector<8x8xf32> to vector<8xf32>
    %136 = vector.shape_cast %135 : vector<8xf32> to vector<8x1xf32>
    %137 = tpu.reciprocal %136 {approx = true} : vector<8x1xf32> -> vector<8x1xf32>
    %138 = vector.broadcast %137 : vector<8x1xf32> to vector<8x8xf32>
    %139 = arith.mulf %134, %138 : vector<8x8xf32>
    %cst_42 = arith.constant dense<0.000000e+00> : vector<8x8xf32>
    %140 = tpu.matmul %139, %128, %cst_42 {dimension_numbers = #tpu.dot_dimension_numbers<[1], [0], [0], [1], [0, 0, 1, 1], [], []>} : vector<8x8xf32>, vector<8x8xf32>, vector<8x8xf32> -> vector<8x8xf32>
    %141 = vector.extract_strided_slice %9 {offsets = [16, 0], sizes = [8, 32], strides = [1, 1]} : vector<32x32xf32> to vector<8x32xf32>
    %cst_43 = arith.constant dense<0.000000e+00> : vector<8x32xf32>
    %142 = tpu.matmul %140, %141, %cst_43 {dimension_numbers = #tpu.dot_dimension_numbers<[1], [0], [0], [1], [0, 0, 1, 1], [], []>} : vector<8x8xf32>, vector<8x32xf32>, vector<8x32xf32> -> vector<8x32xf32>
    %143 = arith.addf %125, %142 : vector<8x32xf32>
    %144 = vector.extract_strided_slice %86 {offsets = [0, 24], sizes = [8, 8], strides = [1, 1]} : vector<8x32xf32> to vector<8x8xf32>
    %145 = vector.extract_strided_slice %87 {offsets = [0, 24], sizes = [8, 8], strides = [1, 1]} : vector<8x32xf32> to vector<8x8xf32>
    %146 = vector.extract_strided_slice %88 {offsets = [0, 24], sizes = [8, 8], strides = [1, 1]} : vector<8x32xf32> to vector<8x8xf32>
    %cst_44 = arith.constant dense<0.000000e+00> : vector<8x8xf32>
    %147 = tpu.matmul %144, %145, %cst_44 {dimension_numbers = #tpu.dot_dimension_numbers<[1], [1], [0], [0], [0, 0, 1, 0], [], []>} : vector<8x8xf32>, vector<8x8xf32>, vector<8x8xf32> -> vector<8x8xf32>
    %cst_45 = arith.constant dense<0xFF800000> : vector<8xf32>
    %148 = vector.multi_reduction <maximumf>, %147, %cst_45 [1] : vector<8x8xf32> to vector<8xf32>
    %149 = vector.shape_cast %148 : vector<8xf32> to vector<8x1xf32>
    %150 = vector.broadcast %149 : vector<8x1xf32> to vector<8x8xf32>
    %151 = arith.subf %147, %150 : vector<8x8xf32>
    %152 = math.exp %151 : vector<8x8xf32>
    %cst_46 = arith.constant dense<0.000000e+00> : vector<8xf32>
    %153 = vector.multi_reduction <add>, %152, %cst_46 [1] : vector<8x8xf32> to vector<8xf32>
    %154 = vector.shape_cast %153 : vector<8xf32> to vector<8x1xf32>
    %155 = tpu.reciprocal %154 {approx = true} : vector<8x1xf32> -> vector<8x1xf32>
    %156 = vector.broadcast %155 : vector<8x1xf32> to vector<8x8xf32>
    %157 = arith.mulf %152, %156 : vector<8x8xf32>
    %cst_47 = arith.constant dense<0.000000e+00> : vector<8x8xf32>
    %158 = tpu.matmul %157, %146, %cst_47 {dimension_numbers = #tpu.dot_dimension_numbers<[1], [0], [0], [1], [0, 0, 1, 1], [], []>} : vector<8x8xf32>, vector<8x8xf32>, vector<8x8xf32> -> vector<8x8xf32>
    %159 = vector.extract_strided_slice %9 {offsets = [24, 0], sizes = [8, 32], strides = [1, 1]} : vector<32x32xf32> to vector<8x32xf32>
    %cst_48 = arith.constant dense<0.000000e+00> : vector<8x32xf32>
    %160 = tpu.matmul %158, %159, %cst_48 {dimension_numbers = #tpu.dot_dimension_numbers<[1], [0], [0], [1], [0, 0, 1, 1], [], []>} : vector<8x8xf32>, vector<8x32xf32>, vector<8x32xf32> -> vector<8x32xf32>
    %161 = arith.addf %143, %160 : vector<8x32xf32>
    %162 = tpu.concatenate %85, %161 in 0 : vector<8x32xf32>, vector<8x32xf32> -> vector<16x32xf32>
    %c0_49 = arith.constant 0 : index
    %c0_50 = arith.constant 0 : index
    %163 = vector.load %arg5[%c0_49, %c0_50] : memref<1x32xf32, #tpu.memory_space<vmem>>, vector<1x32xf32>
    %164 = vector.broadcast %163 : vector<1x32xf32> to vector<16x32xf32>
    %165 = arith.addf %162, %164 : vector<16x32xf32>
    %cst_51 = arith.constant dense<0.000000e+00> : vector<16xf32>
    %166 = vector.multi_reduction <add>, %165, %cst_51 [1] : vector<16x32xf32> to vector<16xf32>
    %167 = vector.shape_cast %166 : vector<16xf32> to vector<16x1xf32>
    %cst_52 = arith.constant 3.200000e+01 : f32
    %168 = vector.broadcast %cst_52 : f32 to vector<16x1xf32>
    %169 = arith.divf %167, %168 : vector<16x1xf32>
    %170 = vector.broadcast %169 : vector<16x1xf32> to vector<16x32xf32>
    %171 = arith.subf %165, %170 : vector<16x32xf32>
    %172 = arith.mulf %171, %171 : vector<16x32xf32>
    %cst_53 = arith.constant dense<0.000000e+00> : vector<16xf32>
    %173 = vector.multi_reduction <add>, %172, %cst_53 [1] : vector<16x32xf32> to vector<16xf32>
    %174 = vector.shape_cast %173 : vector<16xf32> to vector<16x1xf32>
    %cst_54 = arith.constant 3.200000e+01 : f32
    %175 = vector.broadcast %cst_54 : f32 to vector<16x1xf32>
    %176 = arith.divf %174, %175 : vector<16x1xf32>
    %177 = vector.broadcast %169 : vector<16x1xf32> to vector<16x32xf32>
    %178 = arith.subf %165, %177 : vector<16x32xf32>
    %cst_55 = arith.constant 9.99999974E-6 : f32
    %179 = vector.broadcast %cst_55 : f32 to vector<16x1xf32>
    %180 = arith.addf %176, %179 : vector<16x1xf32>
    %181 = math.rsqrt %180 : vector<16x1xf32>
    %182 = vector.broadcast %181 : vector<16x1xf32> to vector<16x32xf32>
    %183 = arith.mulf %178, %182 : vector<16x32xf32>
    %c0_56 = arith.constant 0 : index
    %c0_57 = arith.constant 0 : index
    %184 = vector.load %arg6[%c0_56, %c0_57] : memref<1x32xf32, #tpu.memory_space<vmem>>, vector<1x32xf32>
    %185 = vector.broadcast %184 : vector<1x32xf32> to vector<16x32xf32>
    %186 = arith.mulf %183, %185 : vector<16x32xf32>
    %c0_58 = arith.constant 0 : index
    %c0_59 = arith.constant 0 : index
    %187 = vector.load %arg7[%c0_58, %c0_59] : memref<1x32xf32, #tpu.memory_space<vmem>>, vector<1x32xf32>
    %188 = vector.broadcast %187 : vector<1x32xf32> to vector<16x32xf32>
    %189 = arith.addf %186, %188 : vector<16x32xf32>
    %c0_60 = arith.constant 0 : index
    %c0_61 = arith.constant 0 : index
    %190 = vector.load %arg8[%c0_60, %c0_61] : memref<32x64xf32, #tpu.memory_space<vmem>>, vector<32x64xf32>
    %cst_62 = arith.constant dense<0.000000e+00> : vector<16x64xf32>
    %191 = tpu.matmul %189, %190, %cst_62 {dimension_numbers = #tpu.dot_dimension_numbers<[1], [0], [0], [1], [0, 0, 1, 1], [], []>} : vector<16x32xf32>, vector<32x64xf32>, vector<16x64xf32> -> vector<16x64xf32>
    %c0_63 = arith.constant 0 : index
    %c0_64 = arith.constant 0 : index
    %192 = vector.load %arg9[%c0_63, %c0_64] : memref<1x64xf32, #tpu.memory_space<vmem>>, vector<1x64xf32>
    %193 = vector.broadcast %192 : vector<1x64xf32> to vector<16x64xf32>
    %194 = arith.addf %191, %193 : vector<16x64xf32>
    %cst_65 = arith.constant 0.000000e+00 : f32
    %195 = vector.broadcast %cst_65 : f32 to vector<16x64xf32>
    %196 = arith.maximumf %194, %195 : vector<16x64xf32>
    %c0_66 = arith.constant 0 : index
    %c0_67 = arith.constant 0 : index
    %197 = vector.load %arg10[%c0_66, %c0_67] : memref<64x32xf32, #tpu.memory_space<vmem>>, vector<64x32xf32>
    %cst_68 = arith.constant dense<0.000000e+00> : vector<16x32xf32>
    %198 = tpu.matmul %196, %197, %cst_68 {dimension_numbers = #tpu.dot_dimension_numbers<[1], [0], [0], [1], [0, 0, 1, 1], [], []>} : vector<16x64xf32>, vector<64x32xf32>, vector<16x32xf32> -> vector<16x32xf32>
    %c0_69 = arith.constant 0 : index
    %c0_70 = arith.constant 0 : index
    %199 = vector.load %arg11[%c0_69, %c0_70] : memref<1x32xf32, #tpu.memory_space<vmem>>, vector<1x32xf32>
    %200 = vector.broadcast %199 : vector<1x32xf32> to vector<16x32xf32>
    %201 = arith.addf %198, %200 : vector<16x32xf32>
    %202 = arith.addf %189, %201 : vector<16x32xf32>
    %cst_71 = arith.constant dense<0.000000e+00> : vector<16xf32>
    %203 = vector.multi_reduction <add>, %202, %cst_71 [1] : vector<16x32xf32> to vector<16xf32>
    %204 = vector.shape_cast %203 : vector<16xf32> to vector<16x1xf32>
    %cst_72 = arith.constant 3.200000e+01 : f32
    %205 = vector.broadcast %cst_72 : f32 to vector<16x1xf32>
    %206 = arith.divf %204, %205 : vector<16x1xf32>
    %207 = vector.broadcast %206 : vector<16x1xf32> to vector<16x32xf32>
    %208 = arith.subf %202, %207 : vector<16x32xf32>
    %209 = arith.mulf %208, %208 : vector<16x32xf32>
    %cst_73 = arith.constant dense<0.000000e+00> : vector<16xf32>
    %210 = vector.multi_reduction <add>, %209, %cst_73 [1] : vector<16x32xf32> to vector<16xf32>
    %211 = vector.shape_cast %210 : vector<16xf32> to vector<16x1xf32>
    %cst_74 = arith.constant 3.200000e+01 : f32
    %212 = vector.broadcast %cst_74 : f32 to vector<16x1xf32>
    %213 = arith.divf %211, %212 : vector<16x1xf32>
    %214 = vector.broadcast %206 : vector<16x1xf32> to vector<16x32xf32>
    %215 = arith.subf %202, %214 : vector<16x32xf32>
    %cst_75 = arith.constant 9.99999974E-6 : f32
    %216 = vector.broadcast %cst_75 : f32 to vector<16x1xf32>
    %217 = arith.addf %213, %216 : vector<16x1xf32>
    %218 = math.rsqrt %217 : vector<16x1xf32>
    %219 = vector.broadcast %218 : vector<16x1xf32> to vector<16x32xf32>
    %220 = arith.mulf %215, %219 : vector<16x32xf32>
    %c0_76 = arith.constant 0 : index
    %c0_77 = arith.constant 0 : index
    %221 = vector.load %arg12[%c0_76, %c0_77] : memref<1x32xf32, #tpu.memory_space<vmem>>, vector<1x32xf32>
    %222 = vector.broadcast %221 : vector<1x32xf32> to vector<16x32xf32>
    %223 = arith.mulf %220, %222 : vector<16x32xf32>
    %c0_78 = arith.constant 0 : index
    %c0_79 = arith.constant 0 : index
    %224 = vector.load %arg13[%c0_78, %c0_79] : memref<1x32xf32, #tpu.memory_space<vmem>>, vector<1x32xf32>
    %225 = vector.broadcast %224 : vector<1x32xf32> to vector<16x32xf32>
    %226 = arith.addf %223, %225 : vector<16x32xf32>
    %c0_80 = arith.constant 0 : index
    %c0_81 = arith.constant 0 : index
    %227 = vector.load %arg14[%c0_80, %c0_81] : memref<16x32xf32, #tpu.memory_space<vmem>>, vector<16x32xf32>
    tpu.vector_store %arg14[%c0_80, %c0_81], %226 {strides = array<i32>} : memref<16x32xf32, #tpu.memory_space<vmem>>, vector<16x32xf32>,
    return
  }
  func.func @transform_0(%arg0: i32) -> (i32, i32) {
    %c0_i32 = arith.constant 0 : i32
    %c0_i32_0 = arith.constant 0 : i32
    %c0_i32_1 = arith.constant 0 : i32
    return %c0_i32, %c0_i32_0 : i32, i32
  }
  func.func @transform_1(%arg0: i32) -> (i32, i32) {
    %c0_i32 = arith.constant 0 : i32
    %c0_i32_0 = arith.constant 0 : i32
    %c0_i32_1 = arith.constant 0 : i32
    return %c0_i32, %c0_i32_0 : i32, i32
  }
  func.func @transform_2(%arg0: i32) -> (i32, i32) {
    %c0_i32 = arith.constant 0 : i32
    %c0_i32_0 = arith.constant 0 : i32
    %c0_i32_1 = arith.constant 0 : i32
    return %c0_i32, %c0_i32_0 : i32, i32
  }
  func.func @transform_3(%arg0: i32) -> (i32, i32) {
    %c0_i32 = arith.constant 0 : i32
    %c0_i32_0 = arith.constant 0 : i32
    %c0_i32_1 = arith.constant 0 : i32
    return %c0_i32, %c0_i32_0 : i32, i32
  }
  func.func @transform_4(%arg0: i32) -> (i32, i32) {
    %c0_i32 = arith.constant 0 : i32
    %c0_i32_0 = arith.constant 0 : i32
    %c0_i32_1 = arith.constant 0 : i32
    return %c0_i32, %c0_i32_0 : i32, i32
  }
  func.func @transform_5(%arg0: i32) -> (i32, i32) {
    %c0_i32 = arith.constant 0 : i32
    %c0_i32_0 = arith.constant 0 : i32
    %c0_i32_1 = arith.constant 0 : i32
    return %c0_i32, %c0_i32_0 : i32, i32
  }
  func.func @transform_6(%arg0: i32) -> (i32, i32) {
    %c0_i32 = arith.constant 0 : i32
    %c0_i32_0 = arith.constant 0 : i32
    %c0_i32_1 = arith.constant 0 : i32
    return %c0_i32, %c0_i32_0 : i32, i32
  }
  func.func @transform_7(%arg0: i32) -> (i32, i32) {
    %c0_i32 = arith.constant 0 : i32
    %c0_i32_0 = arith.constant 0 : i32
    %c0_i32_1 = arith.constant 0 : i32
    return %c0_i32, %c0_i32_0 : i32, i32
  }
  func.func @transform_8(%arg0: i32) -> (i32, i32) {
    %c0_i32 = arith.constant 0 : i32
    %c0_i32_0 = arith.constant 0 : i32
    %c0_i32_1 = arith.constant 0 : i32
    return %c0_i32, %c0_i32_0 : i32, i32
  }
  func.func @transform_9(%arg0: i32) -> (i32, i32) {
    %c0_i32 = arith.constant 0 : i32
    %c0_i32_0 = arith.constant 0 : i32
    %c0_i32_1 = arith.constant 0 : i32
    return %c0_i32, %c0_i32_0 : i32, i32
  }
  func.func @transform_10(%arg0: i32) -> (i32, i32) {
    %c0_i32 = arith.constant 0 : i32
    %c0_i32_0 = arith.constant 0 : i32
    %c0_i32_1 = arith.constant 0 : i32
    return %c0_i32, %c0_i32_0 : i32, i32
  }
  func.func @transform_11(%arg0: i32) -> (i32, i32) {
    %c0_i32 = arith.constant 0 : i32
    %c0_i32_0 = arith.constant 0 : i32
    %c0_i32_1 = arith.constant 0 : i32
    return %c0_i32, %c0_i32_0 : i32, i32
  }
  func.func @transform_12(%arg0: i32) -> (i32, i32) {
    %c0_i32 = arith.constant 0 : i32
    %c0_i32_0 = arith.constant 0 : i32
    %c0_i32_1 = arith.constant 0 : i32
    return %c0_i32, %c0_i32_0 : i32, i32
  }
  func.func @transform_13(%arg0: i32) -> (i32, i32) {
    %c0_i32 = arith.constant 0 : i32
    %c0_i32_0 = arith.constant 0 : i32
    %c0_i32_1 = arith.constant 0 : i32
    return %c0_i32, %c0_i32_0 : i32, i32
  }
}

</mosaic_0001>

<llo_original>
// kernel: tpu_custom_call.1
$region0: #{tpu_custom_call.1}
  #allocation0 [shape = 'u32[]', space=smem, size = 0x4, offset = 0x4, fixed_abs, tag = 'smem constant byte address 0x4 - core index']
  #allocation1 [shape = 'u32[144,128]{1,0:T(1,128)}', space=vmem, size = 0x12000, scoped, tag = 'internal scratch']
  %s0 = inlined_call_operand.hbm [shape: f32[16,32], index: 0, kind: input, shape index: {}]
  %s1 = inlined_call_operand.vmem [shape: f32[32,96], index: 1, kind: input, shape index: {}]
  %s2 = inlined_call_operand.vmem [shape: f32[1,96], index: 2, kind: input, shape index: {}]
  %s3 = inlined_call_operand.vmem [shape: f32[32,32], index: 3, kind: input, shape index: {}]
  %s4 = inlined_call_operand.vmem [shape: f32[1,32], index: 4, kind: input, shape index: {}]
  %s5 = inlined_call_operand.hbm [shape: f32[1,32], index: 5, kind: input, shape index: {}]
  %s6 = inlined_call_operand.hbm [shape: f32[1,32], index: 6, kind: input, shape index: {}]
  %s7 = inlined_call_operand.vmem [shape: f32[32,64], index: 7, kind: input, shape index: {}]
  %s8 = inlined_call_operand.hbm [shape: f32[1,64], index: 8, kind: input, shape index: {}]
  %s9 = inlined_call_operand.vmem [shape: f32[64,32], index: 9, kind: input, shape index: {}]
  %s10 = inlined_call_operand.vmem [shape: f32[1,32], index: 10, kind: input, shape index: {}]
  %s11 = inlined_call_operand.vmem [shape: f32[1,32], index: 11, kind: input, shape index: {}]
  %s12 = inlined_call_operand.vmem [shape: f32[1,32], index: 12, kind: input, shape index: {}]
  %s13 = inlined_call_operand.hbm [shape: f32[16,32], index: 13, kind: output, shape index: {}]
  %s14 = sld [smem:[#allocation0]]
  $region78: #{tpu_custom_call.1} parent=0
    _
  %s16 = ssub.s32 1, %s14
  %s17 = scalar_select 0, %s16, %s14
  $region1: #{tpu_custom_call.1} parent=0
    #allocation2 [shape = 'u8[8192]{0}', space=vmem, size = 0x2000, scoped, tag = 'input window, operand 0, single buffered']
    #allocation3 [shape = 's32[1]{0}', space=sflag, size = 0x4, scoped, tag = 'scoped memory for tpu_custom_call.1']
    #allocation4 [shape = 's32[1]{0}', space=sflag, size = 0x4, scoped, tag = 'scoped memory for tpu_custom_call.1']
    #allocation5 [shape = 'u8[512]{0}', space=vmem, size = 0x400, scoped, tag = 'input window, operand 5, single buffered']
    #allocation6 [shape = 's32[1]{0}', space=sflag, size = 0x4, scoped, tag = 'scoped memory for tpu_custom_call.1']
    #allocation7 [shape = 'u8[512]{0}', space=vmem, size = 0x400, scoped, tag = 'input window, operand 6, single buffered']
    #allocation8 [shape = 'u8[512]{0}', space=vmem, size = 0x400, scoped, tag = 'input window, operand 8, single buffered']
    #allocation9 [shape = 's32[1]{0}', space=sflag, size = 0x4, scoped, tag = 'scoped memory for tpu_custom_call.1']
    #allocation10 [shape = 'u8[8192]{0}', space=vmem, size = 0x2000, scoped, tag = 'output window, operand 0, single buffered']
    %18 = vsyncpa [#allocation3], 0
    %19 = vsyncpa [#allocation6], 0
    %20 = vsyncpa [#allocation9], 0
    %21 = vsyncpa [#allocation4], 0
    // Predicated region
    $region2: #{tpu_custom_call.1} parent=1 // pred_check
      _
    $region3: #{tpu_custom_call.1} parent=1 // pred_check_branch
      %23 = sbr.rel (0) target = $region5
    $region4: #{tpu_custom_call.1} parent=1 // pred_region
      %s25 = ssub.s32 256, 256
      %26 = vsyncadd [#allocation3], %s25
      %s27 = sshll.u32 [#allocation2], 4
      %s28 = int_to_ptr.vmem [resolvable:$true] %s27
      %33 = dma.hbm_to_vmem [thread:$0]  %s0, 256, %s28, [#allocation3], 128, 128, 8
    $region5: #{tpu_custom_call.1} parent=1 // pred_fallthru
      _
    // Predicated region
    $region6: #{tpu_custom_call.1} parent=1 // pred_check
      _
    $region7: #{tpu_custom_call.1} parent=1 // pred_check_branch
      %35 = sbr.rel (0) target = $region9
    $region8: #{tpu_custom_call.1} parent=1 // pred_region
      _
    $region9: #{tpu_custom_call.1} parent=1 // pred_fallthru
      _
    // Predicated region
    $region10: #{tpu_custom_call.1} parent=1 // pred_check
      _
    $region11: #{tpu_custom_call.1} parent=1 // pred_check_branch
      %37 = sbr.rel (0) target = $region13
    $region12: #{tpu_custom_call.1} parent=1 // pred_region
      _
    $region13: #{tpu_custom_call.1} parent=1 // pred_fallthru
      _
    // Predicated region
    $region14: #{tpu_custom_call.1} parent=1 // pred_check
      _
    $region15: #{tpu_custom_call.1} parent=1 // pred_check_branch
      %39 = sbr.rel (0) target = $region17
    $region16: #{tpu_custom_call.1} parent=1 // pred_region
      _
    $region17: #{tpu_custom_call.1} parent=1 // pred_fallthru
      _
    // Predicated region
    $region18: #{tpu_custom_call.1} parent=1 // pred_check
      _
    $region19: #{tpu_custom_call.1} parent=1 // pred_check_branch
      %41 = sbr.rel (0) target = $region21
    $region20: #{tpu_custom_call.1} parent=1 // pred_region
      _
    $region21: #{tpu_custom_call.1} parent=1 // pred_fallthru
      _
    // Predicated region
    $region22: #{tpu_custom_call.1} parent=1 // pred_check
      _
    $region23: #{tpu_custom_call.1} parent=1 // pred_check_branch
      %43 = sbr.rel (0) target = $region25
    $region24: #{tpu_custom_call.1} parent=1 // pred_region
      %s45 = ssub.s32 16, 16
      %46 = vsyncadd [#allocation6], %s45
      %s48 = sshll.u32 [#allocation5], 4
      %s49 = int_to_ptr.vmem [resolvable:$true] %s48
      %51 = dma.hbm_to_vmem [thread:$0]  %s5, 16, %s49, [#allocation6]
    $region25: #{tpu_custom_call.1} parent=1 // pred_fallthru
      _
    // Predicated region
    $region26: #{tpu_custom_call.1} parent=1 // pred_check
      _
    $region27: #{tpu_custom_call.1} parent=1 // pred_check_branch
      %53 = sbr.rel (0) target = $region29
    $region28: #{tpu_custom_call.1} parent=1 // pred_region
      %s55 = ssub.s32 16, 16
      %56 = vsyncadd [#allocation6], %s55
      %s58 = sshll.u32 [#allocation7], 4
      %s59 = int_to_ptr.vmem [resolvable:$true] %s58
      %61 = dma.hbm_to_vmem [thread:$0]  %s6, 16, %s59, [#allocation6]
    $region29: #{tpu_custom_call.1} parent=1 // pred_fallthru
      _
    // Predicated region
    $region30: #{tpu_custom_call.1} parent=1 // pred_check
      _
    $region31: #{tpu_custom_call.1} parent=1 // pred_check_branch
      %63 = sbr.rel (0) target = $region33
    $region32: #{tpu_custom_call.1} parent=1 // pred_region
      _
    $region33: #{tpu_custom_call.1} parent=1 // pred_fallthru
      _
    // Predicated region
    $region34: #{tpu_custom_call.1} parent=1 // pred_check
      _
    $region35: #{tpu_custom_call.1} parent=1 // pred_check_branch
      %65 = sbr.rel (0) target = $region37
    $region36: #{tpu_custom_call.1} parent=1 // pred_region
      %s67 = ssub.s32 16, 16
      %68 = vsyncadd [#allocation9], %s67
      %s70 = sshll.u32 [#allocation8], 4
      %s71 = int_to_ptr.vmem [resolvable:$true] %s70
      %73 = dma.hbm_to_vmem [thread:$0]  %s8, 16, %s71, [#allocation9]
    $region37: #{tpu_custom_call.1} parent=1 // pred_fallthru
      _
    // Predicated region
    $region38: #{tpu_custom_call.1} parent=1 // pred_check
      _
    $region39: #{tpu_custom_call.1} parent=1 // pred_check_branch
      %75 = sbr.rel (0) target = $region41
    $region40: #{tpu_custom_call.1} parent=1 // pred_region
      _
    $region41: #{tpu_custom_call.1} parent=1 // pred_fallthru
      _
    // Predicated region
    $region42: #{tpu_custom_call.1} parent=1 // pred_check
      _
    $region43: #{tpu_custom_call.1} parent=1 // pred_check_branch
      %77 = sbr.rel (0) target = $region45
    $region44: #{tpu_custom_call.1} parent=1 // pred_region
      _
    $region45: #{tpu_custom_call.1} parent=1 // pred_fallthru
      _
    // Predicated region
    $region46: #{tpu_custom_call.1} parent=1 // pred_check
      _
    $region47: #{tpu_custom_call.1} parent=1 // pred_check_branch
      %79 = sbr.rel (0) target = $region49
    $region48: #{tpu_custom_call.1} parent=1 // pred_region
      _
    $region49: #{tpu_custom_call.1} parent=1 // pred_fallthru
      _
    // Predicated region
    $region50: #{tpu_custom_call.1} parent=1 // pred_check
      _
    $region51: #{tpu_custom_call.1} parent=1 // pred_check_branch
      %81 = sbr.rel (0) target = $region53
    $region52: #{tpu_custom_call.1} parent=1 // pred_region
      _
    $region53: #{tpu_custom_call.1} parent=1 // pred_fallthru
      _
    // Predicated region
    $region54: #{tpu_custom_call.1} parent=1 // pred_check
      _
    $region55: #{tpu_custom_call.1} parent=1 // pred_check_branch
      %83 = sbr.rel (0) target = $region57
    $region56: #{tpu_custom_call.1} parent=1 // pred_region
      %84 = dma.done [#allocation3], 256
    $region57: #{tpu_custom_call.1} parent=1 // pred_fallthru
      _
    // Predicated region
    $region58: #{tpu_custom_call.1} parent=1 // pred_check
      _
    $region59: #{tpu_custom_call.1} parent=1 // pred_check_branch
      %86 = sbr.rel (0) target = $region61
    $region60: #{tpu_custom_call.1} parent=1 // pred_region
      %87 = dma.done [#allocation6], 16
    $region61: #{tpu_custom_call.1} parent=1 // pred_fallthru
      _
    // Predicated region
    $region62: #{tpu_custom_call.1} parent=1 // pred_check
      _
    $region63: #{tpu_custom_call.1} parent=1 // pred_check_branch
      %89 = sbr.rel (0) target = $region65
    $region64: #{tpu_custom_call.1} parent=1 // pred_region
      %90 = dma.done [#allocation6], 16
    $region65: #{tpu_custom_call.1} parent=1 // pred_fallthru
      _
    // Predicated region
    $region66: #{tpu_custom_call.1} parent=1 // pred_check
      _
    $region67: #{tpu_custom_call.1} parent=1 // pred_check_branch
      %92 = sbr.rel (0) target = $region69
    $region68: #{tpu_custom_call.1} parent=1 // pred_region
      %93 = dma.done [#allocation9], 16
    $region69: #{tpu_custom_call.1} parent=1 // pred_fallthru
      _
    %v94 = vld [vmem:[#allocation2] sm:$0xff]
    %v95 = vld [vmem:[#allocation2 + $0x8] sm:$0xff]
    %v96 = vld [vmem:[%s1] sm:$0xff]
    %v97 = vld [vmem:[%s1 + $0x8] sm:$0xff]
    %v98 = vld [vmem:[%s1 + $0x10] sm:$0xff]
    %v99 = vld [vmem:[%s1 + $0x18] sm:$0xff]
    %v100 = vld [vmem:[%s2] sm:$0x1]
    %v102 = vlaneseq
    %v103 = vshrl.u32 %v102, 7
    %v104 = vsub.s32 0, %v103
    %v105 = vrot.slane %v100, %v104
    %vm107 = vcmask 261120
    %v109 = vsel %vm107, %v94, 0
    %v112 = vsel %vm107, %v95, 0
    %114 = vmatprep.subr.mxu0 0.0
    %115 = vmatpush1.msra.mxu0 %v96
    %116 = vmatprep.subr.mxu0 0.0
    %117 = vmatpush1.msra.mxu0 %v97
    %118 = vmatprep.subr.mxu0 0.0
    %119 = vmatpush1.msra.mxu0 %v98
    %120 = vmatprep.subr.mxu0 0.0
    %121 = vmatpush1.msra.mxu0 %v99
    %122 = vmatprep.subr.mxu0 0.0
    %123 = vmatpush1.msra.mxu0 0.0
    %124 = vmatprep.subr.mxu0 0.0
    %125 = vmatpush1.msra.mxu0 0.0
    %126 = vmatprep.subr.mxu0 0.0
    %127 = vmatpush1.msra.mxu0 0.0
    %128 = vmatprep.subr.mxu0 0.0
    %129 = vmatpush1.msra.mxu0 0.0
    %130 = vmatprep.subr.mxu0 0.0
    %131 = vmatpush1.msra.mxu0 0.0
    %132 = vmatprep.subr.mxu0 0.0
    %133 = vmatpush1.msra.mxu0 0.0
    %134 = vmatprep.subr.mxu0 0.0
    %135 = vmatpush1.msra.mxu0 0.0
    %136 = vmatprep.subr.mxu0 0.0
    %137 = vmatpush1.msra.mxu0 0.0
    %138 = vmatprep.subr.mxu0 0.0
    %139 = vmatpush1.msra.mxu0 0.0
    %140 = vmatprep.subr.mxu0 0.0
    %141 = vmatpush1.msra.mxu0 0.0
    %142 = vmatprep.subr.mxu0 0.0
    %143 = vmatpush1.msra.mxu0 0.0
    %144 = vmatprep.subr.mxu0 0.0
    %145 = vmatpush1.msra.mxu0 0.0
    %146 = vmatprep.subr.mxu0 0.0
    %147 = vmatpush1.msra.mxu0 0.0
    %148 = vmatprep.subr.mxu0 0.0
    %149 = vmatpush1.msra.mxu0 0.0
    %150 = vmatprep.subr.mxu0 0.0
    %151 = vmatpush1.msra.mxu0 0.0
    %152 = vmatprep.subr.mxu0 0.0
    %153 = vmatpush1.msra.mxu0 0.0
    %154 = vmatprep.subr.mxu0 0.0
    %155 = vmatpush1.msra.mxu0 0.0
    %156 = vmatprep.subr.mxu0 0.0
    %157 = vmatpush1.msra.mxu0 0.0
    %158 = vmatprep.subr.mxu0 0.0
    %159 = vmatpush1.msra.mxu0 0.0
    %160 = vmatprep.subr.mxu0 0.0
    %161 = vmatpush1.msra.mxu0 0.0
    %162 = vmatprep.subr.mxu0 0.0
    %163 = vmatpush1.msra.mxu0 0.0
    %164 = vmatprep.subr.mxu0 0.0
    %165 = vmatpush1.msra.mxu0 0.0
    %166 = vmatprep.subr.mxu0 0.0
    %167 = vmatpush1.msra.mxu0 0.0
    %168 = vmatprep.subr.mxu0 0.0
    %169 = vmatpush1.msra.mxu0 0.0
    %170 = vmatprep.subr.mxu0 0.0
    %171 = vmatpush1.msra.mxu0 0.0
    %172 = vmatprep.subr.mxu0 0.0
    %173 = vmatpush1.msra.mxu0 0.0
    %174 = vmatprep.subr.mxu0 0.0
    %175 = vmatpush1.msra.mxu0 0.0
    %176 = vmatprep.subr.mxu0 0.0
    %177 = vmatpush1.msra.mxu0 0.0
    %178 = vmatprep.mubr.f32.mxu0 0.0
    %179 = vmatmul.mubr.f32.gmra.mrb[0].mxu0 %v109
    %v180 = vpop.f32.mrb[0].mxu0
    %v181 = vadd.f32 %v105, %v180
    %v182 = vpop.f32.mrb[0].mxu0
    %183 = vmatprep.mubr.f32.mxu0 0.0
    %184 = vmatmul.mubr.f32.gmra.mrb[0].mxu0 %v112
    %v185 = vpop.f32.mrb[0].mxu0
    %v186 = vadd.f32 %v105, %v185
    %v187 = vpop.f32.mrb[0].mxu0
    %188 = vdwg.mxu0
    %v189 = vld [vmem:[%s3] sm:$0xff]
    %v190 = vld [vmem:[%s3 + $0x8] sm:$0xff]
    %v191 = vld [vmem:[%s3 + $0x10] sm:$0xff]
    %v192 = vld [vmem:[%s3 + $0x18] sm:$0xff]
    %194 = vrot.lane.b32.xlu0 %v181, 96
    %v195 = vpop.permute.xlu0 %194
    %vm196 = vcmask 64512
    %v197 = vsel %vm196, %v181, 0
    %v199 = vsel %vm196, %v195, 0
    %201 = vmatprep.subr.mxu0 0.0
    %202 = vmatpush1.xpose.msra.mxu0 %v199
    %203 = vmatprep.subr.mxu0 0.0
    %204 = vmatpush1.xpose.msra.mxu0 0.0
    %205 = vmatprep.subr.mxu0 0.0
    %206 = vmatpush1.xpose.msra.mxu0 0.0
    %207 = vmatprep.subr.mxu0 0.0
    %208 = vmatpush1.xpose.msra.mxu0 0.0
    %209 = vmatprep.subr.mxu0 0.0
    %210 = vmatpush1.xpose.msra.mxu0 0.0
    %211 = vmatprep.subr.mxu0 0.0
    %212 = vmatpush1.xpose.msra.mxu0 0.0
    %213 = vmatprep.subr.mxu0 0.0
    %214 = vmatpush1.xpose.msra.mxu0 0.0
    %215 = vmatprep.subr.mxu0 0.0
    %216 = vmatpush1.xpose.msra.mxu0 0.0
    %217 = vmatprep.subr.mxu0 0.0
    %218 = vmatpush1.xpose.msra.mxu0 0.0
    %219 = vmatprep.subr.mxu0 0.0
    %220 = vmatpush1.xpose.msra.mxu0 0.0
    %221 = vmatprep.subr.mxu0 0.0
    %222 = vmatpush1.xpose.msra.mxu0 0.0
    %223 = vmatprep.subr.mxu0 0.0
    %224 = vmatpush1.xpose.msra.mxu0 0.0
    %225 = vmatprep.subr.mxu0 0.0
    %226 = vmatpush1.xpose.msra.mxu0 0.0
    %227 = vmatprep.subr.mxu0 0.0
    %228 = vmatpush1.xpose.msra.mxu0 0.0
    %229 = vmatprep.subr.mxu0 0.0
    %230 = vmatpush1.xpose.msra.mxu0 0.0
    %231 = vmatprep.subr.mxu0 0.0
    %232 = vmatpush1.xpose.msra.mxu0 0.0
    %233 = vmatprep.subr.mxu0 0.0
    %234 = vmatpush1.xpose.msra.mxu0 0.0
    %235 = vmatprep.subr.mxu0 0.0
    %236 = vmatpush1.xpose.msra.mxu0 0.0
    %237 = vmatprep.subr.mxu0 0.0
    %238 = vmatpush1.xpose.msra.mxu0 0.0
    %239 = vmatprep.subr.mxu0 0.0
    %240 = vmatpush1.xpose.msra.mxu0 0.0
    %241 = vmatprep.subr.mxu0 0.0
    %242 = vmatpush1.xpose.msra.mxu0 0.0
    %243 = vmatprep.subr.mxu0 0.0
    %244 = vmatpush1.xpose.msra.mxu0 0.0
    %245 = vmatprep.subr.mxu0 0.0
    %246 = vmatpush1.xpose.msra.mxu0 0.0
    %247 = vmatprep.subr.mxu0 0.0
    %248 = vmatpush1.xpose.msra.mxu0 0.0
    %249 = vmatprep.subr.mxu0 0.0
    %250 = vmatpush1.xpose.msra.mxu0 0.0
    %251 = vmatprep.subr.mxu0 0.0
    %252 = vmatpush1.xpose.msra.mxu0 0.0
    %253 = vmatprep.subr.mxu0 0.0
    %254 = vmatpush1.xpose.msra.mxu0 0.0
    %255 = vmatprep.subr.mxu0 0.0
    %256 = vmatpush1.xpose.msra.mxu0 0.0
    %257 = vmatprep.subr.mxu0 0.0
    %258 = vmatpush1.xpose.msra.mxu0 0.0
    %259 = vmatprep.subr.mxu0 0.0
    %260 = vmatpush1.xpose.msra.mxu0 0.0
    %261 = vmatprep.subr.mxu0 0.0
    %262 = vmatpush1.xpose.msra.mxu0 0.0
    %263 = vmatprep.subr.mxu0 0.0
    %264 = vmatpush1.xpose.msra.mxu0 0.0
    %265 = vmatprep.mubr.f32.mxu0 0.0
    %266 = vmatmul.mubr.f32.gmra.mrb[0].mxu0 %v197
    %v267 = vpop.f32.mrb[0].mxu0
    %v268 = vadd.f32 0.0, %v267
    %v269 = vpop.f32.mrb[0].mxu0
    %270 = vdwg.mxu0
    %v271 = vsel %vm196, %v268, -inf
    %272 = vmax.xlane.f32.xlu0 %v271
    %v273 = vpop.xlane.xlu0 %272
    %v274 = vsub.f32 %v268, %v273
    %v275 = vmul.f32 %v274, 1.442695
    %v276 = vpow.pop %v275
    %v277 = vsel %vm196, %v276, 0.0
    %278 = vadd.xlane.f32.xlu0 %v277
    %v279 = vpop.xlane.xlu0 %278
    %v280 = vrcp.pop %v279
    %v281 = vmul.f32 %v276, %v280
    %282 = vrot.lane.b32.xlu0 %v181, 64
    %v283 = vpop.permute.xlu0 %282
    %v286 = vsel %vm196, %v281, 0
    %288 = vmatprep.subr.mxu0 0.0
    %289 = vmatpush1.msra.mxu0 %v283
    %290 = vmatprep.subr.mxu0 0.0
    %291 = vmatpush1.msra.mxu0 0.0
    %292 = vmatprep.subr.mxu0 0.0
    %293 = vmatpush1.msra.mxu0 0.0
    %294 = vmatprep.subr.mxu0 0.0
    %295 = vmatpush1.msra.mxu0 0.0
    %296 = vmatprep.subr.mxu0 0.0
    %297 = vmatpush1.msra.mxu0 0.0
    %298 = vmatprep.subr.mxu0 0.0
    %299 = vmatpush1.msra.mxu0 0.0
    %300 = vmatprep.subr.mxu0 0.0
    %301 = vmatpush1.msra.mxu0 0.0
    %302 = vmatprep.subr.mxu0 0.0
    %303 = vmatpush1.msra.mxu0 0.0
    %304 = vmatprep.subr.mxu0 0.0
    %305 = vmatpush1.msra.mxu0 0.0
    %306 = vmatprep.subr.mxu0 0.0
    %307 = vmatpush1.msra.mxu0 0.0
    %308 = vmatprep.subr.mxu0 0.0
    %309 = vmatpush1.msra.mxu0 0.0
    %310 = vmatprep.subr.mxu0 0.0
    %311 = vmatpush1.msra.mxu0 0.0
    %312 = vmatprep.subr.mxu0 0.0
    %313 = vmatpush1.msra.mxu0 0.0
    %314 = vmatprep.subr.mxu0 0.0
    %315 = vmatpush1.msra.mxu0 0.0
    %316 = vmatprep.subr.mxu0 0.0
    %317 = vmatpush1.msra.mxu0 0.0
    %318 = vmatprep.subr.mxu0 0.0
    %319 = vmatpush1.msra.mxu0 0.0
    %320 = vmatprep.subr.mxu0 0.0
    %321 = vmatpush1.msra.mxu0 0.0
    %322 = vmatprep.subr.mxu0 0.0
    %323 = vmatpush1.msra.mxu0 0.0
    %324 = vmatprep.subr.mxu0 0.0
    %325 = vmatpush1.msra.mxu0 0.0
    %326 = vmatprep.subr.mxu0 0.0
    %327 = vmatpush1.msra.mxu0 0.0
    %328 = vmatprep.subr.mxu0 0.0
    %329 = vmatpush1.msra.mxu0 0.0
    %330 = vmatprep.subr.mxu0 0.0
    %331 = vmatpush1.msra.mxu0 0.0
    %332 = vmatprep.subr.mxu0 0.0
    %333 = vmatpush1.msra.mxu0 0.0
    %334 = vmatprep.subr.mxu0 0.0
    %335 = vmatpush1.msra.mxu0 0.0
    %336 = vmatprep.subr.mxu0 0.0
    %337 = vmatpush1.msra.mxu0 0.0
    %338 = vmatprep.subr.mxu0 0.0
    %339 = vmatpush1.msra.mxu0 0.0
    %340 = vmatprep.subr.mxu0 0.0
    %341 = vmatpush1.msra.mxu0 0.0
    %342 = vmatprep.subr.mxu0 0.0
    %343 = vmatpush1.msra.mxu0 0.0
    %344 = vmatprep.subr.mxu0 0.0
    %345 = vmatpush1.msra.mxu0 0.0
    %346 = vmatprep.subr.mxu0 0.0
    %347 = vmatpush1.msra.mxu0 0.0
    %348 = vmatprep.subr.mxu0 0.0
    %349 = vmatpush1.msra.mxu0 0.0
    %350 = vmatprep.subr.mxu0 0.0
    %351 = vmatpush1.msra.mxu0 0.0
    %352 = vmatprep.mubr.f32.mxu0 0.0
    %353 = vmatmul.mubr.f32.gmra.mrb[0].mxu0 %v286
    %v354 = vpop.f32.mrb[0].mxu0
    %v355 = vadd.f32 0.0, %v354
    %v356 = vpop.f32.mrb[0].mxu0
    %357 = vdwg.mxu0
    %358 = vrot.lane.b32.xlu0 %v181, 120
    %v359 = vpop.permute.xlu0 %358
    %360 = vrot.lane.b32.xlu0 %v181, 88
    %v361 = vpop.permute.xlu0 %360
    %v362 = vsel %vm196, %v359, 0
    %v364 = vsel %vm196, %v361, 0
    %366 = vmatprep.subr.mxu0 0.0
    %367 = vmatpush1.xpose.msra.mxu0 %v364
    %368 = vmatprep.subr.mxu0 0.0
    %369 = vmatpush1.xpose.msra.mxu0 0.0
    %370 = vmatprep.subr.mxu0 0.0
    %371 = vmatpush1.xpose.msra.mxu0 0.0
    %372 = vmatprep.subr.mxu0 0.0
    %373 = vmatpush1.xpose.msra.mxu0 0.0
    %374 = vmatprep.subr.mxu0 0.0
    %375 = vmatpush1.xpose.msra.mxu0 0.0
    %376 = vmatprep.subr.mxu0 0.0
    %377 = vmatpush1.xpose.msra.mxu0 0.0
    %378 = vmatprep.subr.mxu0 0.0
    %379 = vmatpush1.xpose.msra.mxu0 0.0
    %380 = vmatprep.subr.mxu0 0.0
    %381 = vmatpush1.xpose.msra.mxu0 0.0
    %382 = vmatprep.subr.mxu0 0.0
    %383 = vmatpush1.xpose.msra.mxu0 0.0
    %384 = vmatprep.subr.mxu0 0.0
    %385 = vmatpush1.xpose.msra.mxu0 0.0
    %386 = vmatprep.subr.mxu0 0.0
    %387 = vmatpush1.xpose.msra.mxu0 0.0
    %388 = vmatprep.subr.mxu0 0.0
    %389 = vmatpush1.xpose.msra.mxu0 0.0
    %390 = vmatprep.subr.mxu0 0.0
    %391 = vmatpush1.xpose.msra.mxu0 0.0
    %392 = vmatprep.subr.mxu0 0.0
    %393 = vmatpush1.xpose.msra.mxu0 0.0
    %394 = vmatprep.subr.mxu0 0.0
    %395 = vmatpush1.xpose.msra.mxu0 0.0
    %396 = vmatprep.subr.mxu0 0.0
    %397 = vmatpush1.xpose.msra.mxu0 0.0
    %398 = vmatprep.subr.mxu0 0.0
    %399 = vmatpush1.xpose.msra.mxu0 0.0
    %400 = vmatprep.subr.mxu0 0.0
    %401 = vmatpush1.xpose.msra.mxu0 0.0
    %402 = vmatprep.subr.mxu0 0.0
    %403 = vmatpush1.xpose.msra.mxu0 0.0
    %404 = vmatprep.subr.mxu0 0.0
    %405 = vmatpush1.xpose.msra.mxu0 0.0
    %406 = vmatprep.subr.mxu0 0.0
    %407 = vmatpush1.xpose.msra.mxu0 0.0
    %408 = vmatprep.subr.mxu0 0.0
    %409 = vmatpush1.xpose.msra.mxu0 0.0
    %410 = vmatprep.subr.mxu0 0.0
    %411 = vmatpush1.xpose.msra.mxu0 0.0
    %412 = vmatprep.subr.mxu0 0.0
    %413 = vmatpush1.xpose.msra.mxu0 0.0
    %414 = vmatprep.subr.mxu0 0.0
    %415 = vmatpush1.xpose.msra.mxu0 0.0
    %416 = vmatprep.subr.mxu0 0.0
    %417 = vmatpush1.xpose.msra.mxu0 0.0
    %418 = vmatprep.subr.mxu0 0.0
    %419 = vmatpush1.xpose.msra.mxu0 0.0
    %420 = vmatprep.subr.mxu0 0.0
    %421 = vmatpush1.xpose.msra.mxu0 0.0
    %422 = vmatprep.subr.mxu0 0.0
    %423 = vmatpush1.xpose.msra.mxu0 0.0
    %424 = vmatprep.subr.mxu0 0.0
    %425 = vmatpush1.xpose.msra.mxu0 0.0
    %426 = vmatprep.subr.mxu0 0.0
    %427 = vmatpush1.xpose.msra.mxu0 0.0
    %428 = vmatprep.subr.mxu0 0.0
    %429 = vmatpush1.xpose.msra.mxu0 0.0
    %430 = vmatprep.mubr.f32.mxu0 0.0
    %431 = vmatmul.mubr.f32.gmra.mrb[0].mxu0 %v362
    %v432 = vpop.f32.mrb[0].mxu0
    %v433 = vadd.f32 0.0, %v432
    %v434 = vpop.f32.mrb[0].mxu0
    %435 = vdwg.mxu0
    %v436 = vsel %vm196, %v433, -inf
    %437 = vmax.xlane.f32.xlu0 %v436
    %v438 = vpop.xlane.xlu0 %437
    %v439 = vsub.f32 %v433, %v438
    %v440 = vmul.f32 %v439, 1.442695
    %v441 = vpow.pop %v440
    %v442 = vsel %vm196, %v441, 0.0
    %443 = vadd.xlane.f32.xlu0 %v442
    %v444 = vpop.xlane.xlu0 %443
    %v445 = vrcp.pop %v444
    %v446 = vmul.f32 %v441, %v445
    %447 = vrot.lane.b32.xlu0 %v181, 56
    %v448 = vpop.permute.xlu0 %447
    %v451 = vsel %vm196, %v446, 0
    %453 = vmatprep.subr.mxu0 0.0
    %454 = vmatpush1.msra.mxu0 %v448
    %455 = vmatprep.subr.mxu0 0.0
    %456 = vmatpush1.msra.mxu0 0.0
    %457 = vmatprep.subr.mxu0 0.0
    %458 = vmatpush1.msra.mxu0 0.0
    %459 = vmatprep.subr.mxu0 0.0
    %460 = vmatpush1.msra.mxu0 0.0
    %461 = vmatprep.subr.mxu0 0.0
    %462 = vmatpush1.msra.mxu0 0.0
    %463 = vmatprep.subr.mxu0 0.0
    %464 = vmatpush1.msra.mxu0 0.0
    %465 = vmatprep.subr.mxu0 0.0
    %466 = vmatpush1.msra.mxu0 0.0
    %467 = vmatprep.subr.mxu0 0.0
    %468 = vmatpush1.msra.mxu0 0.0
    %469 = vmatprep.subr.mxu0 0.0
    %470 = vmatpush1.msra.mxu0 0.0
    %471 = vmatprep.subr.mxu0 0.0
    %472 = vmatpush1.msra.mxu0 0.0
    %473 = vmatprep.subr.mxu0 0.0
    %474 = vmatpush1.msra.mxu0 0.0
    %475 = vmatprep.subr.mxu0 0.0
    %476 = vmatpush1.msra.mxu0 0.0
    %477 = vmatprep.subr.mxu0 0.0
    %478 = vmatpush1.msra.mxu0 0.0
    %479 = vmatprep.subr.mxu0 0.0
    %480 = vmatpush1.msra.mxu0 0.0
    %481 = vmatprep.subr.mxu0 0.0
    %482 = vmatpush1.msra.mxu0 0.0
    %483 = vmatprep.subr.mxu0 0.0
    %484 = vmatpush1.msra.mxu0 0.0
    %485 = vmatprep.subr.mxu0 0.0
    %486 = vmatpush1.msra.mxu0 0.0
    %487 = vmatprep.subr.mxu0 0.0
    %488 = vmatpush1.msra.mxu0 0.0
    %489 = vmatprep.subr.mxu0 0.0
    %490 = vmatpush1.msra.mxu0 0.0
    %491 = vmatprep.subr.mxu0 0.0
    %492 = vmatpush1.msra.mxu0 0.0
    %493 = vmatprep.subr.mxu0 0.0
    %494 = vmatpush1.msra.mxu0 0.0
    %495 = vmatprep.subr.mxu0 0.0
    %496 = vmatpush1.msra.mxu0 0.0
    %497 = vmatprep.subr.mxu0 0.0
    %498 = vmatpush1.msra.mxu0 0.0
    %499 = vmatprep.subr.mxu0 0.0
    %500 = vmatpush1.msra.mxu0 0.0
    %501 = vmatprep.subr.mxu0 0.0
    %502 = vmatpush1.msra.mxu0 0.0
    %503 = vmatprep.subr.mxu0 0.0
    %504 = vmatpush1.msra.mxu0 0.0
    %505 = vmatprep.subr.mxu0 0.0
    %506 = vmatpush1.msra.mxu0 0.0
    %507 = vmatprep.subr.mxu0 0.0
    %508 = vmatpush1.msra.mxu0 0.0
    %509 = vmatprep.subr.mxu0 0.0
    %510 = vmatpush1.msra.mxu0 0.0
    %511 = vmatprep.subr.mxu0 0.0
    %512 = vmatpush1.msra.mxu0 0.0
    %513 = vmatprep.subr.mxu0 0.0
    %514 = vmatpush1.msra.mxu0 0.0
    %515 = vmatprep.subr.mxu0 0.0
    %516 = vmatpush1.msra.mxu0 0.0
    %517 = vmatprep.mubr.f32.mxu0 0.0
    %518 = vmatmul.mubr.f32.gmra.mrb[0].mxu0 %v451
    %v519 = vpop.f32.mrb[0].mxu0
    %v520 = vadd.f32 0.0, %v519
    %v521 = vpop.f32.mrb[0].mxu0
    %522 = vdwg.mxu0
    %v524 = vsel %vm196, %v520, 0
    %526 = vmatprep.subr.mxu0 0.0
    %527 = vmatpush1.msra.mxu0 %v190
    %528 = vmatprep.subr.mxu0 0.0
    %529 = vmatpush1.msra.mxu0 0.0
    %530 = vmatprep.subr.mxu0 0.0
    %531 = vmatpush1.msra.mxu0 0.0
    %532 = vmatprep.subr.mxu0 0.0
    %533 = vmatpush1.msra.mxu0 0.0
    %534 = vmatprep.subr.mxu0 0.0
    %535 = vmatpush1.msra.mxu0 0.0
    %536 = vmatprep.subr.mxu0 0.0
    %537 = vmatpush1.msra.mxu0 0.0
    %538 = vmatprep.subr.mxu0 0.0
    %539 = vmatpush1.msra.mxu0 0.0
    %540 = vmatprep.subr.mxu0 0.0
    %541 = vmatpush1.msra.mxu0 0.0
    %542 = vmatprep.subr.mxu0 0.0
    %543 = vmatpush1.msra.mxu0 0.0
    %544 = vmatprep.subr.mxu0 0.0
    %545 = vmatpush1.msra.mxu0 0.0
    %546 = vmatprep.subr.mxu0 0.0
    %547 = vmatpush1.msra.mxu0 0.0
    %548 = vmatprep.subr.mxu0 0.0
    %549 = vmatpush1.msra.mxu0 0.0
    %550 = vmatprep.subr.mxu0 0.0
    %551 = vmatpush1.msra.mxu0 0.0
    %552 = vmatprep.subr.mxu0 0.0
    %553 = vmatpush1.msra.mxu0 0.0
    %554 = vmatprep.subr.mxu0 0.0
    %555 = vmatpush1.msra.mxu0 0.0
    %556 = vmatprep.subr.mxu0 0.0
    %557 = vmatpush1.msra.mxu0 0.0
    %558 = vmatprep.subr.mxu0 0.0
    %559 = vmatpush1.msra.mxu0 0.0
    %560 = vmatprep.subr.mxu0 0.0
    %561 = vmatpush1.msra.mxu0 0.0
    %562 = vmatprep.subr.mxu0 0.0
    %563 = vmatpush1.msra.mxu0 0.0
    %564 = vmatprep.subr.mxu0 0.0
    %565 = vmatpush1.msra.mxu0 0.0
    %566 = vmatprep.subr.mxu0 0.0
    %567 = vmatpush1.msra.mxu0 0.0
    %568 = vmatprep.subr.mxu0 0.0
    %569 = vmatpush1.msra.mxu0 0.0
    %570 = vmatprep.subr.mxu0 0.0
    %571 = vmatpush1.msra.mxu0 0.0
    %572 = vmatprep.subr.mxu0 0.0
    %573 = vmatpush1.msra.mxu0 0.0
    %574 = vmatprep.subr.mxu0 0.0
    %575 = vmatpush1.msra.mxu0 0.0
    %576 = vmatprep.subr.mxu0 0.0
    %577 = vmatpush1.msra.mxu0 0.0
    %578 = vmatprep.subr.mxu0 0.0
    %579 = vmatpush1.msra.mxu0 0.0
    %580 = vmatprep.subr.mxu0 0.0
    %581 = vmatpush1.msra.mxu0 0.0
    %582 = vmatprep.subr.mxu0 0.0
    %583 = vmatpush1.msra.mxu0 0.0
    %584 = vmatprep.subr.mxu0 0.0
    %585 = vmatpush1.msra.mxu0 0.0
    %586 = vmatprep.subr.mxu0 0.0
    %587 = vmatpush1.msra.mxu0 0.0
    %588 = vmatprep.subr.mxu0 0.0
    %589 = vmatpush1.msra.mxu0 0.0
    %590 = vmatprep.mubr.f32.mxu0 0.0
    %591 = vmatmul.mubr.f32.gmra.mrb[0].mxu0 %v524
    %v592 = vpop.f32.mrb[0].mxu0
    %v593 = vadd.f32 0.0, %v592
    %v594 = vpop.f32.mrb[0].mxu0
    %595 = vdwg.mxu0
    %v597 = vsel %vm196, %v355, 0
    %599 = vmatprep.subr.mxu0 0.0
    %600 = vmatpush1.msra.mxu0 %v189
    %601 = vmatprep.subr.mxu0 0.0
    %602 = vmatpush1.msra.mxu0 0.0
    %603 = vmatprep.subr.mxu0 0.0
    %604 = vmatpush1.msra.mxu0 0.0
    %605 = vmatprep.subr.mxu0 0.0
    %606 = vmatpush1.msra.mxu0 0.0
    %607 = vmatprep.subr.mxu0 0.0
    %608 = vmatpush1.msra.mxu0 0.0
    %609 = vmatprep.subr.mxu0 0.0
    %610 = vmatpush1.msra.mxu0 0.0
    %611 = vmatprep.subr.mxu0 0.0
    %612 = vmatpush1.msra.mxu0 0.0
    %613 = vmatprep.subr.mxu0 0.0
    %614 = vmatpush1.msra.mxu0 0.0
    %615 = vmatprep.subr.mxu0 0.0
    %616 = vmatpush1.msra.mxu0 0.0
    %617 = vmatprep.subr.mxu0 0.0
    %618 = vmatpush1.msra.mxu0 0.0
    %619 = vmatprep.subr.mxu0 0.0
    %620 = vmatpush1.msra.mxu0 0.0
    %621 = vmatprep.subr.mxu0 0.0
    %622 = vmatpush1.msra.mxu0 0.0
    %623 = vmatprep.subr.mxu0 0.0
    %624 = vmatpush1.msra.mxu0 0.0
    %625 = vmatprep.subr.mxu0 0.0
    %626 = vmatpush1.msra.mxu0 0.0
    %627 = vmatprep.subr.mxu0 0.0
    %628 = vmatpush1.msra.mxu0 0.0
    %629 = vmatprep.subr.mxu0 0.0
    %630 = vmatpush1.msra.mxu0 0.0
    %631 = vmatprep.subr.mxu0 0.0
    %632 = vmatpush1.msra.mxu0 0.0
    %633 = vmatprep.subr.mxu0 0.0
    %634 = vmatpush1.msra.mxu0 0.0
    %635 = vmatprep.subr.mxu0 0.0
    %636 = vmatpush1.msra.mxu0 0.0
    %637 = vmatprep.subr.mxu0 0.0
    %638 = vmatpush1.msra.mxu0 0.0
    %639 = vmatprep.subr.mxu0 0.0
    %640 = vmatpush1.msra.mxu0 0.0
    %641 = vmatprep.subr.mxu0 0.0
    %642 = vmatpush1.msra.mxu0 0.0
    %643 = vmatprep.subr.mxu0 0.0
    %644 = vmatpush1.msra.mxu0 0.0
    %645 = vmatprep.subr.mxu0 0.0
    %646 = vmatpush1.msra.mxu0 0.0
    %647 = vmatprep.subr.mxu0 0.0
    %648 = vmatpush1.msra.mxu0 0.0
    %649 = vmatprep.subr.mxu0 0.0
    %650 = vmatpush1.msra.mxu0 0.0
    %651 = vmatprep.subr.mxu0 0.0
    %652 = vmatpush1.msra.mxu0 0.0
    %653 = vmatprep.subr.mxu0 0.0
    %654 = vmatpush1.msra.mxu0 0.0
    %655 = vmatprep.subr.mxu0 0.0
    %656 = vmatpush1.msra.mxu0 0.0
    %657 = vmatprep.subr.mxu0 0.0
    %658 = vmatpush1.msra.mxu0 0.0
    %659 = vmatprep.subr.mxu0 0.0
    %660 = vmatpush1.msra.mxu0 0.0
    %661 = vmatprep.subr.mxu0 0.0
    %662 = vmatpush1.msra.mxu0 0.0
    %663 = vmatprep.mubr.f32.mxu0 0.0
    %664 = vmatmul.mubr.f32.gmra.mrb[0].mxu0 %v597
    %v665 = vpop.f32.mrb[0].mxu0
    %v666 = vadd.f32 %v593, %v665
    %v667 = vpop.f32.mrb[0].mxu0
    %668 = vdwg.mxu0
    %669 = vrot.lane.b32.xlu0 %v181, 112
    %v670 = vpop.permute.xlu0 %669
    %671 = vrot.lane.b32.xlu0 %v181, 80
    %v672 = vpop.permute.xlu0 %671
    %v673 = vsel %vm196, %v670, 0
    %v675 = vsel %vm196, %v672, 0
    %677 = vmatprep.subr.mxu0 0.0
    %678 = vmatpush1.xpose.msra.mxu0 %v675
    %679 = vmatprep.subr.mxu0 0.0
    %680 = vmatpush1.xpose.msra.mxu0 0.0
    %681 = vmatprep.subr.mxu0 0.0
    %682 = vmatpush1.xpose.msra.mxu0 0.0
    %683 = vmatprep.subr.mxu0 0.0
    %684 = vmatpush1.xpose.msra.mxu0 0.0
    %685 = vmatprep.subr.mxu0 0.0
    %686 = vmatpush1.xpose.msra.mxu0 0.0
    %687 = vmatprep.subr.mxu0 0.0
    %688 = vmatpush1.xpose.msra.mxu0 0.0
    %689 = vmatprep.subr.mxu0 0.0
    %690 = vmatpush1.xpose.msra.mxu0 0.0
    %691 = vmatprep.subr.mxu0 0.0
    %692 = vmatpush1.xpose.msra.mxu0 0.0
    %693 = vmatprep.subr.mxu0 0.0
    %694 = vmatpush1.xpose.msra.mxu0 0.0
    %695 = vmatprep.subr.mxu0 0.0
    %696 = vmatpush1.xpose.msra.mxu0 0.0
    %697 = vmatprep.subr.mxu0 0.0
    %698 = vmatpush1.xpose.msra.mxu0 0.0
    %699 = vmatprep.subr.mxu0 0.0
    %700 = vmatpush1.xpose.msra.mxu0 0.0
    %701 = vmatprep.subr.mxu0 0.0
    %702 = vmatpush1.xpose.msra.mxu0 0.0
    %703 = vmatprep.subr.mxu0 0.0
    %704 = vmatpush1.xpose.msra.mxu0 0.0
    %705 = vmatprep.subr.mxu0 0.0
    %706 = vmatpush1.xpose.msra.mxu0 0.0
    %707 = vmatprep.subr.mxu0 0.0
    %708 = vmatpush1.xpose.msra.mxu0 0.0
    %709 = vmatprep.subr.mxu0 0.0
    %710 = vmatpush1.xpose.msra.mxu0 0.0
    %711 = vmatprep.subr.mxu0 0.0
    %712 = vmatpush1.xpose.msra.mxu0 0.0
    %713 = vmatprep.subr.mxu0 0.0
    %714 = vmatpush1.xpose.msra.mxu0 0.0
    %715 = vmatprep.subr.mxu0 0.0
    %716 = vmatpush1.xpose.msra.mxu0 0.0
    %717 = vmatprep.subr.mxu0 0.0
    %718 = vmatpush1.xpose.msra.mxu0 0.0
    %719 = vmatprep.subr.mxu0 0.0
    %720 = vmatpush1.xpose.msra.mxu0 0.0
    %721 = vmatprep.subr.mxu0 0.0
    %722 = vmatpush1.xpose.msra.mxu0 0.0
    %723 = vmatprep.subr.mxu0 0.0
    %724 = vmatpush1.xpose.msra.mxu0 0.0
    %725 = vmatprep.subr.mxu0 0.0
    %726 = vmatpush1.xpose.msra.mxu0 0.0
    %727 = vmatprep.subr.mxu0 0.0
    %728 = vmatpush1.xpose.msra.mxu0 0.0
    %729 = vmatprep.subr.mxu0 0.0
    %730 = vmatpush1.xpose.msra.mxu0 0.0
    %731 = vmatprep.subr.mxu0 0.0
    %732 = vmatpush1.xpose.msra.mxu0 0.0
    %733 = vmatprep.subr.mxu0 0.0
    %734 = vmatpush1.xpose.msra.mxu0 0.0
    %735 = vmatprep.subr.mxu0 0.0
    %736 = vmatpush1.xpose.msra.mxu0 0.0
    %737 = vmatprep.subr.mxu0 0.0
    %738 = vmatpush1.xpose.msra.mxu0 0.0
    %739 = vmatprep.subr.mxu0 0.0
    %740 = vmatpush1.xpose.msra.mxu0 0.0
    %741 = vmatprep.mubr.f32.mxu0 0.0
    %742 = vmatmul.mubr.f32.gmra.mrb[0].mxu0 %v673
    %v743 = vpop.f32.mrb[0].mxu0
    %v744 = vadd.f32 0.0, %v743
    %v745 = vpop.f32.mrb[0].mxu0
    %746 = vdwg.mxu0
    %v747 = vsel %vm196, %v744, -inf
    %748 = vmax.xlane.f32.xlu0 %v747
    %v749 = vpop.xlane.xlu0 %748
    %v750 = vsub.f32 %v744, %v749
    %v751 = vmul.f32 %v750, 1.442695
    %v752 = vpow.pop %v751
    %v753 = vsel %vm196, %v752, 0.0
    %754 = vadd.xlane.f32.xlu0 %v753
    %v755 = vpop.xlane.xlu0 %754
    %v756 = vrcp.pop %v755
    %v757 = vmul.f32 %v752, %v756
    %758 = vrot.lane.b32.xlu0 %v181, 48
    %v759 = vpop.permute.xlu0 %758
    %v762 = vsel %vm196, %v757, 0
    %764 = vmatprep.subr.mxu0 0.0
    %765 = vmatpush1.msra.mxu0 %v759
    %766 = vmatprep.subr.mxu0 0.0
    %767 = vmatpush1.msra.mxu0 0.0
    %768 = vmatprep.subr.mxu0 0.0
    %769 = vmatpush1.msra.mxu0 0.0
    %770 = vmatprep.subr.mxu0 0.0
    %771 = vmatpush1.msra.mxu0 0.0
    %772 = vmatprep.subr.mxu0 0.0
    %773 = vmatpush1.msra.mxu0 0.0
    %774 = vmatprep.subr.mxu0 0.0
    %775 = vmatpush1.msra.mxu0 0.0
    %776 = vmatprep.subr.mxu0 0.0
    %777 = vmatpush1.msra.mxu0 0.0
    %778 = vmatprep.subr.mxu0 0.0
    %779 = vmatpush1.msra.mxu0 0.0
    %780 = vmatprep.subr.mxu0 0.0
    %781 = vmatpush1.msra.mxu0 0.0
    %782 = vmatprep.subr.mxu0 0.0
    %783 = vmatpush1.msra.mxu0 0.0
    %784 = vmatprep.subr.mxu0 0.0
    %785 = vmatpush1.msra.mxu0 0.0
    %786 = vmatprep.subr.mxu0 0.0
    %787 = vmatpush1.msra.mxu0 0.0
    %788 = vmatprep.subr.mxu0 0.0
    %789 = vmatpush1.msra.mxu0 0.0
    %790 = vmatprep.subr.mxu0 0.0
    %791 = vmatpush1.msra.mxu0 0.0
    %792 = vmatprep.subr.mxu0 0.0
    %793 = vmatpush1.msra.mxu0 0.0
    %794 = vmatprep.subr.mxu0 0.0
    %795 = vmatpush1.msra.mxu0 0.0
    %796 = vmatprep.subr.mxu0 0.0
    %797 = vmatpush1.msra.mxu0 0.0
    %798 = vmatprep.subr.mxu0 0.0
    %799 = vmatpush1.msra.mxu0 0.0
    %800 = vmatprep.subr.mxu0 0.0
    %801 = vmatpush1.msra.mxu0 0.0
    %802 = vmatprep.subr.mxu0 0.0
    %803 = vmatpush1.msra.mxu0 0.0
    %804 = vmatprep.subr.mxu0 0.0
    %805 = vmatpush1.msra.mxu0 0.0
    %806 = vmatprep.subr.mxu0 0.0
    %807 = vmatpush1.msra.mxu0 0.0
    %808 = vmatprep.subr.mxu0 0.0
    %809 = vmatpush1.msra.mxu0 0.0
    %810 = vmatprep.subr.mxu0 0.0
    %811 = vmatpush1.msra.mxu0 0.0
    %812 = vmatprep.subr.mxu0 0.0
    %813 = vmatpush1.msra.mxu0 0.0
    %814 = vmatprep.subr.mxu0 0.0
    %815 = vmatpush1.msra.mxu0 0.0
    %816 = vmatprep.subr.mxu0 0.0
    %817 = vmatpush1.msra.mxu0 0.0
    %818 = vmatprep.subr.mxu0 0.0
    %819 = vmatpush1.msra.mxu0 0.0
    %820 = vmatprep.subr.mxu0 0.0
    %821 = vmatpush1.msra.mxu0 0.0
    %822 = vmatprep.subr.mxu0 0.0
    %823 = vmatpush1.msra.mxu0 0.0
    %824 = vmatprep.subr.mxu0 0.0
    %825 = vmatpush1.msra.mxu0 0.0
    %826 = vmatprep.subr.mxu0 0.0
    %827 = vmatpush1.msra.mxu0 0.0
    %828 = vmatprep.mubr.f32.mxu0 0.0
    %829 = vmatmul.mubr.f32.gmra.mrb[0].mxu0 %v762
    %v830 = vpop.f32.mrb[0].mxu0
    %v831 = vadd.f32 0.0, %v830
    %v832 = vpop.f32.mrb[0].mxu0
    %833 = vdwg.mxu0
    %v835 = vsel %vm196, %v831, 0
    %837 = vmatprep.subr.mxu0 0.0
    %838 = vmatpush1.msra.mxu0 %v191
    %839 = vmatprep.subr.mxu0 0.0
    %840 = vmatpush1.msra.mxu0 0.0
    %841 = vmatprep.subr.mxu0 0.0
    %842 = vmatpush1.msra.mxu0 0.0
    %843 = vmatprep.subr.mxu0 0.0
    %844 = vmatpush1.msra.mxu0 0.0
    %845 = vmatprep.subr.mxu0 0.0
    %846 = vmatpush1.msra.mxu0 0.0
    %847 = vmatprep.subr.mxu0 0.0
    %848 = vmatpush1.msra.mxu0 0.0
    %849 = vmatprep.subr.mxu0 0.0
    %850 = vmatpush1.msra.mxu0 0.0
    %851 = vmatprep.subr.mxu0 0.0
    %852 = vmatpush1.msra.mxu0 0.0
    %853 = vmatprep.subr.mxu0 0.0
    %854 = vmatpush1.msra.mxu0 0.0
    %855 = vmatprep.subr.mxu0 0.0
    %856 = vmatpush1.msra.mxu0 0.0
    %857 = vmatprep.subr.mxu0 0.0
    %858 = vmatpush1.msra.mxu0 0.0
    %859 = vmatprep.subr.mxu0 0.0
    %860 = vmatpush1.msra.mxu0 0.0
    %861 = vmatprep.subr.mxu0 0.0
    %862 = vmatpush1.msra.mxu0 0.0
    %863 = vmatprep.subr.mxu0 0.0
    %864 = vmatpush1.msra.mxu0 0.0
    %865 = vmatprep.subr.mxu0 0.0
    %866 = vmatpush1.msra.mxu0 0.0
    %867 = vmatprep.subr.mxu0 0.0
    %868 = vmatpush1.msra.mxu0 0.0
    %869 = vmatprep.subr.mxu0 0.0
    %870 = vmatpush1.msra.mxu0 0.0
    %871 = vmatprep.subr.mxu0 0.0
    %872 = vmatpush1.msra.mxu0 0.0
    %873 = vmatprep.subr.mxu0 0.0
    %874 = vmatpush1.msra.mxu0 0.0
    %875 = vmatprep.subr.mxu0 0.0
    %876 = vmatpush1.msra.mxu0 0.0
    %877 = vmatprep.subr.mxu0 0.0
    %878 = vmatpush1.msra.mxu0 0.0
    %879 = vmatprep.subr.mxu0 0.0
    %880 = vmatpush1.msra.mxu0 0.0
    %881 = vmatprep.subr.mxu0 0.0
    %882 = vmatpush1.msra.mxu0 0.0
    %883 = vmatprep.subr.mxu0 0.0
    %884 = vmatpush1.msra.mxu0 0.0
    %885 = vmatprep.subr.mxu0 0.0
    %886 = vmatpush1.msra.mxu0 0.0
    %887 = vmatprep.subr.mxu0 0.0
    %888 = vmatpush1.msra.mxu0 0.0
    %889 = vmatprep.subr.mxu0 0.0
    %890 = vmatpush1.msra.mxu0 0.0
    %891 = vmatprep.subr.mxu0 0.0
    %892 = vmatpush1.msra.mxu0 0.0
    %893 = vmatprep.subr.mxu0 0.0
    %894 = vmatpush1.msra.mxu0 0.0
    %895 = vmatprep.subr.mxu0 0.0
    %896 = vmatpush1.msra.mxu0 0.0
    %897 = vmatprep.subr.mxu0 0.0
    %898 = vmatpush1.msra.mxu0 0.0
    %899 = vmatprep.subr.mxu0 0.0
    %900 = vmatpush1.msra.mxu0 0.0
    %901 = vmatprep.mubr.f32.mxu0 0.0
    %902 = vmatmul.mubr.f32.gmra.mrb[0].mxu0 %v835
    %v903 = vpop.f32.mrb[0].mxu0
    %v904 = vadd.f32 0.0, %v903
    %v905 = vpop.f32.mrb[0].mxu0
    %906 = vdwg.mxu0
    %v907 = vadd.f32 %v666, %v904
    %908 = vrot.lane.b32.xlu0 %v181, 104
    %v909 = vpop.permute.xlu0 %908
    %910 = vrot.lane.b32.xlu0 %v181, 72
    %v911 = vpop.permute.xlu0 %910
    %v912 = vsel %vm196, %v909, 0
    %v914 = vsel %vm196, %v911, 0
    %916 = vmatprep.subr.mxu0 0.0
    %917 = vmatpush1.xpose.msra.mxu0 %v914
    %918 = vmatprep.subr.mxu0 0.0
    %919 = vmatpush1.xpose.msra.mxu0 0.0
    %920 = vmatprep.subr.mxu0 0.0
    %921 = vmatpush1.xpose.msra.mxu0 0.0
    %922 = vmatprep.subr.mxu0 0.0
    %923 = vmatpush1.xpose.msra.mxu0 0.0
    %924 = vmatprep.subr.mxu0 0.0
    %925 = vmatpush1.xpose.msra.mxu0 0.0
    %926 = vmatprep.subr.mxu0 0.0
    %927 = vmatpush1.xpose.msra.mxu0 0.0
    %928 = vmatprep.subr.mxu0 0.0
    %929 = vmatpush1.xpose.msra.mxu0 0.0
    %930 = vmatprep.subr.mxu0 0.0
    %931 = vmatpush1.xpose.msra.mxu0 0.0
    %932 = vmatprep.subr.mxu0 0.0
    %933 = vmatpush1.xpose.msra.mxu0 0.0
    %934 = vmatprep.subr.mxu0 0.0
    %935 = vmatpush1.xpose.msra.mxu0 0.0
    %936 = vmatprep.subr.mxu0 0.0
    %937 = vmatpush1.xpose.msra.mxu0 0.0
    %938 = vmatprep.subr.mxu0 0.0
    %939 = vmatpush1.xpose.msra.mxu0 0.0
    %940 = vmatprep.subr.mxu0 0.0
    %941 = vmatpush1.xpose.msra.mxu0 0.0
    %942 = vmatprep.subr.mxu0 0.0
    %943 = vmatpush1.xpose.msra.mxu0 0.0
    %944 = vmatprep.subr.mxu0 0.0
    %945 = vmatpush1.xpose.msra.mxu0 0.0
    %946 = vmatprep.subr.mxu0 0.0
    %947 = vmatpush1.xpose.msra.mxu0 0.0
    %948 = vmatprep.subr.mxu0 0.0
    %949 = vmatpush1.xpose.msra.mxu0 0.0
    %950 = vmatprep.subr.mxu0 0.0
    %951 = vmatpush1.xpose.msra.mxu0 0.0
    %952 = vmatprep.subr.mxu0 0.0
    %953 = vmatpush1.xpose.msra.mxu0 0.0
    %954 = vmatprep.subr.mxu0 0.0
    %955 = vmatpush1.xpose.msra.mxu0 0.0
    %956 = vmatprep.subr.mxu0 0.0
    %957 = vmatpush1.xpose.msra.mxu0 0.0
    %958 = vmatprep.subr.mxu0 0.0
    %959 = vmatpush1.xpose.msra.mxu0 0.0
    %960 = vmatprep.subr.mxu0 0.0
    %961 = vmatpush1.xpose.msra.mxu0 0.0
    %962 = vmatprep.subr.mxu0 0.0
    %963 = vmatpush1.xpose.msra.mxu0 0.0
    %964 = vmatprep.subr.mxu0 0.0
    %965 = vmatpush1.xpose.msra.mxu0 0.0
    %966 = vmatprep.subr.mxu0 0.0
    %967 = vmatpush1.xpose.msra.mxu0 0.0
    %968 = vmatprep.subr.mxu0 0.0
    %969 = vmatpush1.xpose.msra.mxu0 0.0
    %970 = vmatprep.subr.mxu0 0.0
    %971 = vmatpush1.xpose.msra.mxu0 0.0
    %972 = vmatprep.subr.mxu0 0.0
    %973 = vmatpush1.xpose.msra.mxu0 0.0
    %974 = vmatprep.subr.mxu0 0.0
    %975 = vmatpush1.xpose.msra.mxu0 0.0
    %976 = vmatprep.subr.mxu0 0.0
    %977 = vmatpush1.xpose.msra.mxu0 0.0
    %978 = vmatprep.subr.mxu0 0.0
    %979 = vmatpush1.xpose.msra.mxu0 0.0
    %980 = vmatprep.mubr.f32.mxu0 0.0
    %981 = vmatmul.mubr.f32.gmra.mrb[0].mxu0 %v912
    %v982 = vpop.f32.mrb[0].mxu0
    %v983 = vadd.f32 0.0, %v982
    %v984 = vpop.f32.mrb[0].mxu0
    %985 = vdwg.mxu0
    %v986 = vsel %vm196, %v983, -inf
    %987 = vmax.xlane.f32.xlu0 %v986
    %v988 = vpop.xlane.xlu0 %987
    %v989 = vsub.f32 %v983, %v988
    %v990 = vmul.f32 %v989, 1.442695
    %v991 = vpow.pop %v990
    %v992 = vsel %vm196, %v991, 0.0
    %993 = vadd.xlane.f32.xlu0 %v992
    %v994 = vpop.xlane.xlu0 %993
    %v995 = vrcp.pop %v994
    %v996 = vmul.f32 %v991, %v995
    %997 = vrot.lane.b32.xlu0 %v181, 40
    %v998 = vpop.permute.xlu0 %997
    %v1001 = vsel %vm196, %v996, 0
    %1003 = vmatprep.subr.mxu0 0.0
    %1004 = vmatpush1.msra.mxu0 %v998
    %1005 = vmatprep.subr.mxu0 0.0
    %1006 = vmatpush1.msra.mxu0 0.0
    %1007 = vmatprep.subr.mxu0 0.0
    %1008 = vmatpush1.msra.mxu0 0.0
    %1009 = vmatprep.subr.mxu0 0.0
    %1010 = vmatpush1.msra.mxu0 0.0
    %1011 = vmatprep.subr.mxu0 0.0
    %1012 = vmatpush1.msra.mxu0 0.0
    %1013 = vmatprep.subr.mxu0 0.0
    %1014 = vmatpush1.msra.mxu0 0.0
    %1015 = vmatprep.subr.mxu0 0.0
    %1016 = vmatpush1.msra.mxu0 0.0
    %1017 = vmatprep.subr.mxu0 0.0
    %1018 = vmatpush1.msra.mxu0 0.0
    %1019 = vmatprep.subr.mxu0 0.0
    %1020 = vmatpush1.msra.mxu0 0.0
    %1021 = vmatprep.subr.mxu0 0.0
    %1022 = vmatpush1.msra.mxu0 0.0
    %1023 = vmatprep.subr.mxu0 0.0
    %1024 = vmatpush1.msra.mxu0 0.0
    %1025 = vmatprep.subr.mxu0 0.0
    %1026 = vmatpush1.msra.mxu0 0.0
    %1027 = vmatprep.subr.mxu0 0.0
    %1028 = vmatpush1.msra.mxu0 0.0
    %1029 = vmatprep.subr.mxu0 0.0
    %1030 = vmatpush1.msra.mxu0 0.0
    %1031 = vmatprep.subr.mxu0 0.0
    %1032 = vmatpush1.msra.mxu0 0.0
    %1033 = vmatprep.subr.mxu0 0.0
    %1034 = vmatpush1.msra.mxu0 0.0
    %1035 = vmatprep.subr.mxu0 0.0
    %1036 = vmatpush1.msra.mxu0 0.0
    %1037 = vmatprep.subr.mxu0 0.0
    %1038 = vmatpush1.msra.mxu0 0.0
    %1039 = vmatprep.subr.mxu0 0.0
    %1040 = vmatpush1.msra.mxu0 0.0
    %1041 = vmatprep.subr.mxu0 0.0
    %1042 = vmatpush1.msra.mxu0 0.0
    %1043 = vmatprep.subr.mxu0 0.0
    %1044 = vmatpush1.msra.mxu0 0.0
    %1045 = vmatprep.subr.mxu0 0.0
    %1046 = vmatpush1.msra.mxu0 0.0
    %1047 = vmatprep.subr.mxu0 0.0
    %1048 = vmatpush1.msra.mxu0 0.0
    %1049 = vmatprep.subr.mxu0 0.0
    %1050 = vmatpush1.msra.mxu0 0.0
    %1051 = vmatprep.subr.mxu0 0.0
    %1052 = vmatpush1.msra.mxu0 0.0
    %1053 = vmatprep.subr.mxu0 0.0
    %1054 = vmatpush1.msra.mxu0 0.0
    %1055 = vmatprep.subr.mxu0 0.0
    %1056 = vmatpush1.msra.mxu0 0.0
    %1057 = vmatprep.subr.mxu0 0.0
    %1058 = vmatpush1.msra.mxu0 0.0
    %1059 = vmatprep.subr.mxu0 0.0
    %1060 = vmatpush1.msra.mxu0 0.0
    %1061 = vmatprep.subr.mxu0 0.0
    %1062 = vmatpush1.msra.mxu0 0.0
    %1063 = vmatprep.subr.mxu0 0.0
    %1064 = vmatpush1.msra.mxu0 0.0
    %1065 = vmatprep.subr.mxu0 0.0
    %1066 = vmatpush1.msra.mxu0 0.0
    %1067 = vmatprep.mubr.f32.mxu0 0.0
    %1068 = vmatmul.mubr.f32.gmra.mrb[0].mxu0 %v1001
    %v1069 = vpop.f32.mrb[0].mxu0
    %v1070 = vadd.f32 0.0, %v1069
    %v1071 = vpop.f32.mrb[0].mxu0
    %1072 = vdwg.mxu0
    %v1074 = vsel %vm196, %v1070, 0
    %1076 = vmatprep.subr.mxu0 0.0
    %1077 = vmatpush1.msra.mxu0 %v192
    %1078 = vmatprep.subr.mxu0 0.0
    %1079 = vmatpush1.msra.mxu0 0.0
    %1080 = vmatprep.subr.mxu0 0.0
    %1081 = vmatpush1.msra.mxu0 0.0
    %1082 = vmatprep.subr.mxu0 0.0
    %1083 = vmatpush1.msra.mxu0 0.0
    %1084 = vmatprep.subr.mxu0 0.0
    %1085 = vmatpush1.msra.mxu0 0.0
    %1086 = vmatprep.subr.mxu0 0.0
    %1087 = vmatpush1.msra.mxu0 0.0
    %1088 = vmatprep.subr.mxu0 0.0
    %1089 = vmatpush1.msra.mxu0 0.0
    %1090 = vmatprep.subr.mxu0 0.0
    %1091 = vmatpush1.msra.mxu0 0.0
    %1092 = vmatprep.subr.mxu0 0.0
    %1093 = vmatpush1.msra.mxu0 0.0
    %1094 = vmatprep.subr.mxu0 0.0
    %1095 = vmatpush1.msra.mxu0 0.0
    %1096 = vmatprep.subr.mxu0 0.0
    %1097 = vmatpush1.msra.mxu0 0.0
    %1098 = vmatprep.subr.mxu0 0.0
    %1099 = vmatpush1.msra.mxu0 0.0
    %1100 = vmatprep.subr.mxu0 0.0
    %1101 = vmatpush1.msra.mxu0 0.0
    %1102 = vmatprep.subr.mxu0 0.0
    %1103 = vmatpush1.msra.mxu0 0.0
    %1104 = vmatprep.subr.mxu0 0.0
    %1105 = vmatpush1.msra.mxu0 0.0
    %1106 = vmatprep.subr.mxu0 0.0
    %1107 = vmatpush1.msra.mxu0 0.0
    %1108 = vmatprep.subr.mxu0 0.0
    %1109 = vmatpush1.msra.mxu0 0.0
    %1110 = vmatprep.subr.mxu0 0.0
    %1111 = vmatpush1.msra.mxu0 0.0
    %1112 = vmatprep.subr.mxu0 0.0
    %1113 = vmatpush1.msra.mxu0 0.0
    %1114 = vmatprep.subr.mxu0 0.0
    %1115 = vmatpush1.msra.mxu0 0.0
    %1116 = vmatprep.subr.mxu0 0.0
    %1117 = vmatpush1.msra.mxu0 0.0
    %1118 = vmatprep.subr.mxu0 0.0
    %1119 = vmatpush1.msra.mxu0 0.0
    %1120 = vmatprep.subr.mxu0 0.0
    %1121 = vmatpush1.msra.mxu0 0.0
    %1122 = vmatprep.subr.mxu0 0.0
    %1123 = vmatpush1.msra.mxu0 0.0
    %1124 = vmatprep.subr.mxu0 0.0
    %1125 = vmatpush1.msra.mxu0 0.0
    %1126 = vmatprep.subr.mxu0 0.0
    %1127 = vmatpush1.msra.mxu0 0.0
    %1128 = vmatprep.subr.mxu0 0.0
    %1129 = vmatpush1.msra.mxu0 0.0
    %1130 = vmatprep.subr.mxu0 0.0
    %1131 = vmatpush1.msra.mxu0 0.0
    %1132 = vmatprep.subr.mxu0 0.0
    %1133 = vmatpush1.msra.mxu0 0.0
    %1134 = vmatprep.subr.mxu0 0.0
    %1135 = vmatpush1.msra.mxu0 0.0
    %1136 = vmatprep.subr.mxu0 0.0
    %1137 = vmatpush1.msra.mxu0 0.0
    %1138 = vmatprep.subr.mxu0 0.0
    %1139 = vmatpush1.msra.mxu0 0.0
    %1140 = vmatprep.mubr.f32.mxu0 0.0
    %1141 = vmatmul.mubr.f32.gmra.mrb[0].mxu0 %v1074
    %v1142 = vpop.f32.mrb[0].mxu0
    %v1143 = vadd.f32 0.0, %v1142
    %v1144 = vpop.f32.mrb[0].mxu0
    %1145 = vdwg.mxu0
    %v1146 = vadd.f32 %v907, %v1143
    %1148 = vrot.lane.b32.xlu0 %v186, 96
    %v1149 = vpop.permute.xlu0 %1148
    %v1150 = vsel %vm196, %v186, 0
    %v1152 = vsel %vm196, %v1149, 0
    %1154 = vmatprep.subr.mxu0 0.0
    %1155 = vmatpush1.xpose.msra.mxu0 %v1152
    %1156 = vmatprep.subr.mxu0 0.0
    %1157 = vmatpush1.xpose.msra.mxu0 0.0
    %1158 = vmatprep.subr.mxu0 0.0
    %1159 = vmatpush1.xpose.msra.mxu0 0.0
    %1160 = vmatprep.subr.mxu0 0.0
    %1161 = vmatpush1.xpose.msra.mxu0 0.0
    %1162 = vmatprep.subr.mxu0 0.0
    %1163 = vmatpush1.xpose.msra.mxu0 0.0
    %1164 = vmatprep.subr.mxu0 0.0
    %1165 = vmatpush1.xpose.msra.mxu0 0.0
    %1166 = vmatprep.subr.mxu0 0.0
    %1167 = vmatpush1.xpose.msra.mxu0 0.0
    %1168 = vmatprep.subr.mxu0 0.0
    %1169 = vmatpush1.xpose.msra.mxu0 0.0
    %1170 = vmatprep.subr.mxu0 0.0
    %1171 = vmatpush1.xpose.msra.mxu0 0.0
    %1172 = vmatprep.subr.mxu0 0.0
    %1173 = vmatpush1.xpose.msra.mxu0 0.0
    %1174 = vmatprep.subr.mxu0 0.0
    %1175 = vmatpush1.xpose.msra.mxu0 0.0
    %1176 = vmatprep.subr.mxu0 0.0
    %1177 = vmatpush1.xpose.msra.mxu0 0.0
    %1178 = vmatprep.subr.mxu0 0.0
    %1179 = vmatpush1.xpose.msra.mxu0 0.0
    %1180 = vmatprep.subr.mxu0 0.0
    %1181 = vmatpush1.xpose.msra.mxu0 0.0
    %1182 = vmatprep.subr.mxu0 0.0
    %1183 = vmatpush1.xpose.msra.mxu0 0.0
    %1184 = vmatprep.subr.mxu0 0.0
    %1185 = vmatpush1.xpose.msra.mxu0 0.0
    %1186 = vmatprep.subr.mxu0 0.0
    %1187 = vmatpush1.xpose.msra.mxu0 0.0
    %1188 = vmatprep.subr.mxu0 0.0
    %1189 = vmatpush1.xpose.msra.mxu0 0.0
    %1190 = vmatprep.subr.mxu0 0.0
    %1191 = vmatpush1.xpose.msra.mxu0 0.0
    %1192 = vmatprep.subr.mxu0 0.0
    %1193 = vmatpush1.xpose.msra.mxu0 0.0
    %1194 = vmatprep.subr.mxu0 0.0
    %1195 = vmatpush1.xpose.msra.mxu0 0.0
    %1196 = vmatprep.subr.mxu0 0.0
    %1197 = vmatpush1.xpose.msra.mxu0 0.0
    %1198 = vmatprep.subr.mxu0 0.0
    %1199 = vmatpush1.xpose.msra.mxu0 0.0
    %1200 = vmatprep.subr.mxu0 0.0
    %1201 = vmatpush1.xpose.msra.mxu0 0.0
    %1202 = vmatprep.subr.mxu0 0.0
    %1203 = vmatpush1.xpose.msra.mxu0 0.0
    %1204 = vmatprep.subr.mxu0 0.0
    %1205 = vmatpush1.xpose.msra.mxu0 0.0
    %1206 = vmatprep.subr.mxu0 0.0
    %1207 = vmatpush1.xpose.msra.mxu0 0.0
    %1208 = vmatprep.subr.mxu0 0.0
    %1209 = vmatpush1.xpose.msra.mxu0 0.0
    %1210 = vmatprep.subr.mxu0 0.0
    %1211 = vmatpush1.xpose.msra.mxu0 0.0
    %1212 = vmatprep.subr.mxu0 0.0
    %1213 = vmatpush1.xpose.msra.mxu0 0.0
    %1214 = vmatprep.subr.mxu0 0.0
    %1215 = vmatpush1.xpose.msra.mxu0 0.0
    %1216 = vmatprep.subr.mxu0 0.0
    %1217 = vmatpush1.xpose.msra.mxu0 0.0
    %1218 = vmatprep.mubr.f32.mxu0 0.0
    %1219 = vmatmul.mubr.f32.gmra.mrb[0].mxu0 %v1150
    %v1220 = vpop.f32.mrb[0].mxu0
    %v1221 = vadd.f32 0.0, %v1220
    %v1222 = vpop.f32.mrb[0].mxu0
    %1223 = vdwg.mxu0
    %v1224 = vsel %vm196, %v1221, -inf
    %1225 = vmax.xlane.f32.xlu0 %v1224
    %v1226 = vpop.xlane.xlu0 %1225
    %v1227 = vsub.f32 %v1221, %v1226
    %v1228 = vmul.f32 %v1227, 1.442695
    %v1229 = vpow.pop %v1228
    %v1230 = vsel %vm196, %v1229, 0.0
    %1231 = vadd.xlane.f32.xlu0 %v1230
    %v1232 = vpop.xlane.xlu0 %1231
    %v1233 = vrcp.pop %v1232
    %v1234 = vmul.f32 %v1229, %v1233
    %1235 = vrot.lane.b32.xlu0 %v186, 64
    %v1236 = vpop.permute.xlu0 %1235
    %v1239 = vsel %vm196, %v1234, 0
    %1241 = vmatprep.subr.mxu0 0.0
    %1242 = vmatpush1.msra.mxu0 %v1236
    %1243 = vmatprep.subr.mxu0 0.0
    %1244 = vmatpush1.msra.mxu0 0.0
    %1245 = vmatprep.subr.mxu0 0.0
    %1246 = vmatpush1.msra.mxu0 0.0
    %1247 = vmatprep.subr.mxu0 0.0
    %1248 = vmatpush1.msra.mxu0 0.0
    %1249 = vmatprep.subr.mxu0 0.0
    %1250 = vmatpush1.msra.mxu0 0.0
    %1251 = vmatprep.subr.mxu0 0.0
    %1252 = vmatpush1.msra.mxu0 0.0
    %1253 = vmatprep.subr.mxu0 0.0
    %1254 = vmatpush1.msra.mxu0 0.0
    %1255 = vmatprep.subr.mxu0 0.0
    %1256 = vmatpush1.msra.mxu0 0.0
    %1257 = vmatprep.subr.mxu0 0.0
    %1258 = vmatpush1.msra.mxu0 0.0
    %1259 = vmatprep.subr.mxu0 0.0
    %1260 = vmatpush1.msra.mxu0 0.0
    %1261 = vmatprep.subr.mxu0 0.0
    %1262 = vmatpush1.msra.mxu0 0.0
    %1263 = vmatprep.subr.mxu0 0.0
    %1264 = vmatpush1.msra.mxu0 0.0
    %1265 = vmatprep.subr.mxu0 0.0
    %1266 = vmatpush1.msra.mxu0 0.0
    %1267 = vmatprep.subr.mxu0 0.0
    %1268 = vmatpush1.msra.mxu0 0.0
    %1269 = vmatprep.subr.mxu0 0.0
    %1270 = vmatpush1.msra.mxu0 0.0
    %1271 = vmatprep.subr.mxu0 0.0
    %1272 = vmatpush1.msra.mxu0 0.0
    %1273 = vmatprep.subr.mxu0 0.0
    %1274 = vmatpush1.msra.mxu0 0.0
    %1275 = vmatprep.subr.mxu0 0.0
    %1276 = vmatpush1.msra.mxu0 0.0
    %1277 = vmatprep.subr.mxu0 0.0
    %1278 = vmatpush1.msra.mxu0 0.0
    %1279 = vmatprep.subr.mxu0 0.0
    %1280 = vmatpush1.msra.mxu0 0.0
    %1281 = vmatprep.subr.mxu0 0.0
    %1282 = vmatpush1.msra.mxu0 0.0
    %1283 = vmatprep.subr.mxu0 0.0
    %1284 = vmatpush1.msra.mxu0 0.0
    %1285 = vmatprep.subr.mxu0 0.0
    %1286 = vmatpush1.msra.mxu0 0.0
    %1287 = vmatprep.subr.mxu0 0.0
    %1288 = vmatpush1.msra.mxu0 0.0
    %1289 = vmatprep.subr.mxu0 0.0
    %1290 = vmatpush1.msra.mxu0 0.0
    %1291 = vmatprep.subr.mxu0 0.0
    %1292 = vmatpush1.msra.mxu0 0.0
    %1293 = vmatprep.subr.mxu0 0.0
    %1294 = vmatpush1.msra.mxu0 0.0
    %1295 = vmatprep.subr.mxu0 0.0
    %1296 = vmatpush1.msra.mxu0 0.0
    %1297 = vmatprep.subr.mxu0 0.0
    %1298 = vmatpush1.msra.mxu0 0.0
    %1299 = vmatprep.subr.mxu0 0.0
    %1300 = vmatpush1.msra.mxu0 0.0
    %1301 = vmatprep.subr.mxu0 0.0
    %1302 = vmatpush1.msra.mxu0 0.0
    %1303 = vmatprep.subr.mxu0 0.0
    %1304 = vmatpush1.msra.mxu0 0.0
    %1305 = vmatprep.mubr.f32.mxu0 0.0
    %1306 = vmatmul.mubr.f32.gmra.mrb[0].mxu0 %v1239
    %v1307 = vpop.f32.mrb[0].mxu0
    %v1308 = vadd.f32 0.0, %v1307
    %v1309 = vpop.f32.mrb[0].mxu0
    %1310 = vdwg.mxu0
    %1311 = vrot.lane.b32.xlu0 %v186, 120
    %v1312 = vpop.permute.xlu0 %1311
    %1313 = vrot.lane.b32.xlu0 %v186, 88
    %v1314 = vpop.permute.xlu0 %1313
    %v1315 = vsel %vm196, %v1312, 0
    %v1317 = vsel %vm196, %v1314, 0
    %1319 = vmatprep.subr.mxu0 0.0
    %1320 = vmatpush1.xpose.msra.mxu0 %v1317
    %1321 = vmatprep.subr.mxu0 0.0
    %1322 = vmatpush1.xpose.msra.mxu0 0.0
    %1323 = vmatprep.subr.mxu0 0.0
    %1324 = vmatpush1.xpose.msra.mxu0 0.0
    %1325 = vmatprep.subr.mxu0 0.0
    %1326 = vmatpush1.xpose.msra.mxu0 0.0
    %1327 = vmatprep.subr.mxu0 0.0
    %1328 = vmatpush1.xpose.msra.mxu0 0.0
    %1329 = vmatprep.subr.mxu0 0.0
    %1330 = vmatpush1.xpose.msra.mxu0 0.0
    %1331 = vmatprep.subr.mxu0 0.0
    %1332 = vmatpush1.xpose.msra.mxu0 0.0
    %1333 = vmatprep.subr.mxu0 0.0
    %1334 = vmatpush1.xpose.msra.mxu0 0.0
    %1335 = vmatprep.subr.mxu0 0.0
    %1336 = vmatpush1.xpose.msra.mxu0 0.0
    %1337 = vmatprep.subr.mxu0 0.0
    %1338 = vmatpush1.xpose.msra.mxu0 0.0
    %1339 = vmatprep.subr.mxu0 0.0
    %1340 = vmatpush1.xpose.msra.mxu0 0.0
    %1341 = vmatprep.subr.mxu0 0.0
    %1342 = vmatpush1.xpose.msra.mxu0 0.0
    %1343 = vmatprep.subr.mxu0 0.0
    %1344 = vmatpush1.xpose.msra.mxu0 0.0
    %1345 = vmatprep.subr.mxu0 0.0
    %1346 = vmatpush1.xpose.msra.mxu0 0.0
    %1347 = vmatprep.subr.mxu0 0.0
    %1348 = vmatpush1.xpose.msra.mxu0 0.0
    %1349 = vmatprep.subr.mxu0 0.0
    %1350 = vmatpush1.xpose.msra.mxu0 0.0
    %1351 = vmatprep.subr.mxu0 0.0
    %1352 = vmatpush1.xpose.msra.mxu0 0.0
    %1353 = vmatprep.subr.mxu0 0.0
    %1354 = vmatpush1.xpose.msra.mxu0 0.0
    %1355 = vmatprep.subr.mxu0 0.0
    %1356 = vmatpush1.xpose.msra.mxu0 0.0
    %1357 = vmatprep.subr.mxu0 0.0
    %1358 = vmatpush1.xpose.msra.mxu0 0.0
    %1359 = vmatprep.subr.mxu0 0.0
    %1360 = vmatpush1.xpose.msra.mxu0 0.0
    %1361 = vmatprep.subr.mxu0 0.0
    %1362 = vmatpush1.xpose.msra.mxu0 0.0
    %1363 = vmatprep.subr.mxu0 0.0
    %1364 = vmatpush1.xpose.msra.mxu0 0.0
    %1365 = vmatprep.subr.mxu0 0.0
    %1366 = vmatpush1.xpose.msra.mxu0 0.0
    %1367 = vmatprep.subr.mxu0 0.0
    %1368 = vmatpush1.xpose.msra.mxu0 0.0
    %1369 = vmatprep.subr.mxu0 0.0
    %1370 = vmatpush1.xpose.msra.mxu0 0.0
    %1371 = vmatprep.subr.mxu0 0.0
    %1372 = vmatpush1.xpose.msra.mxu0 0.0
    %1373 = vmatprep.subr.mxu0 0.0
    %1374 = vmatpush1.xpose.msra.mxu0 0.0
    %1375 = vmatprep.subr.mxu0 0.0
    %1376 = vmatpush1.xpose.msra.mxu0 0.0
    %1377 = vmatprep.subr.mxu0 0.0
    %1378 = vmatpush1.xpose.msra.mxu0 0.0
    %1379 = vmatprep.subr.mxu0 0.0
    %1380 = vmatpush1.xpose.msra.mxu0 0.0
    %1381 = vmatprep.subr.mxu0 0.0
    %1382 = vmatpush1.xpose.msra.mxu0 0.0
    %1383 = vmatprep.mubr.f32.mxu0 0.0
    %1384 = vmatmul.mubr.f32.gmra.mrb[0].mxu0 %v1315
    %v1385 = vpop.f32.mrb[0].mxu0
    %v1386 = vadd.f32 0.0, %v1385
    %v1387 = vpop.f32.mrb[0].mxu0
    %1388 = vdwg.mxu0
    %v1389 = vsel %vm196, %v1386, -inf
    %1390 = vmax.xlane.f32.xlu0 %v1389
    %v1391 = vpop.xlane.xlu0 %1390
    %v1392 = vsub.f32 %v1386, %v1391
    %v1393 = vmul.f32 %v1392, 1.442695
    %v1394 = vpow.pop %v1393
    %v1395 = vsel %vm196, %v1394, 0.0
    %1396 = vadd.xlane.f32.xlu0 %v1395
    %v1397 = vpop.xlane.xlu0 %1396
    %v1398 = vrcp.pop %v1397
    %v1399 = vmul.f32 %v1394, %v1398
    %1400 = vrot.lane.b32.xlu0 %v186, 56
    %v1401 = vpop.permute.xlu0 %1400
    %v1404 = vsel %vm196, %v1399, 0
    %1406 = vmatprep.subr.mxu0 0.0
    %1407 = vmatpush1.msra.mxu0 %v1401
    %1408 = vmatprep.subr.mxu0 0.0
    %1409 = vmatpush1.msra.mxu0 0.0
    %1410 = vmatprep.subr.mxu0 0.0
    %1411 = vmatpush1.msra.mxu0 0.0
    %1412 = vmatprep.subr.mxu0 0.0
    %1413 = vmatpush1.msra.mxu0 0.0
    %1414 = vmatprep.subr.mxu0 0.0
    %1415 = vmatpush1.msra.mxu0 0.0
    %1416 = vmatprep.subr.mxu0 0.0
    %1417 = vmatpush1.msra.mxu0 0.0
    %1418 = vmatprep.subr.mxu0 0.0
    %1419 = vmatpush1.msra.mxu0 0.0
    %1420 = vmatprep.subr.mxu0 0.0
    %1421 = vmatpush1.msra.mxu0 0.0
    %1422 = vmatprep.subr.mxu0 0.0
    %1423 = vmatpush1.msra.mxu0 0.0
    %1424 = vmatprep.subr.mxu0 0.0
    %1425 = vmatpush1.msra.mxu0 0.0
    %1426 = vmatprep.subr.mxu0 0.0
    %1427 = vmatpush1.msra.mxu0 0.0
    %1428 = vmatprep.subr.mxu0 0.0
    %1429 = vmatpush1.msra.mxu0 0.0
    %1430 = vmatprep.subr.mxu0 0.0
    %1431 = vmatpush1.msra.mxu0 0.0
    %1432 = vmatprep.subr.mxu0 0.0
    %1433 = vmatpush1.msra.mxu0 0.0
    %1434 = vmatprep.subr.mxu0 0.0
    %1435 = vmatpush1.msra.mxu0 0.0
    %1436 = vmatprep.subr.mxu0 0.0
    %1437 = vmatpush1.msra.mxu0 0.0
    %1438 = vmatprep.subr.mxu0 0.0
    %1439 = vmatpush1.msra.mxu0 0.0
    %1440 = vmatprep.subr.mxu0 0.0
    %1441 = vmatpush1.msra.mxu0 0.0
    %1442 = vmatprep.subr.mxu0 0.0
    %1443 = vmatpush1.msra.mxu0 0.0
    %1444 = vmatprep.subr.mxu0 0.0
    %1445 = vmatpush1.msra.mxu0 0.0
    %1446 = vmatprep.subr.mxu0 0.0
    %1447 = vmatpush1.msra.mxu0 0.0
    %1448 = vmatprep.subr.mxu0 0.0
    %1449 = vmatpush1.msra.mxu0 0.0
    %1450 = vmatprep.subr.mxu0 0.0
    %1451 = vmatpush1.msra.mxu0 0.0
    %1452 = vmatprep.subr.mxu0 0.0
    %1453 = vmatpush1.msra.mxu0 0.0
    %1454 = vmatprep.subr.mxu0 0.0
    %1455 = vmatpush1.msra.mxu0 0.0
    %1456 = vmatprep.subr.mxu0 0.0
    %1457 = vmatpush1.msra.mxu0 0.0
    %1458 = vmatprep.subr.mxu0 0.0
    %1459 = vmatpush1.msra.mxu0 0.0
    %1460 = vmatprep.subr.mxu0 0.0
    %1461 = vmatpush1.msra.mxu0 0.0
    %1462 = vmatprep.subr.mxu0 0.0
    %1463 = vmatpush1.msra.mxu0 0.0
    %1464 = vmatprep.subr.mxu0 0.0
    %1465 = vmatpush1.msra.mxu0 0.0
    %1466 = vmatprep.subr.mxu0 0.0
    %1467 = vmatpush1.msra.mxu0 0.0
    %1468 = vmatprep.subr.mxu0 0.0
    %1469 = vmatpush1.msra.mxu0 0.0
    %1470 = vmatprep.mubr.f32.mxu0 0.0
    %1471 = vmatmul.mubr.f32.gmra.mrb[0].mxu0 %v1404
    %v1472 = vpop.f32.mrb[0].mxu0
    %v1473 = vadd.f32 0.0, %v1472
    %v1474 = vpop.f32.mrb[0].mxu0
    %1475 = vdwg.mxu0
    %v1477 = vsel %vm196, %v1473, 0
    %1479 = vmatprep.subr.mxu0 0.0
    %1480 = vmatpush1.msra.mxu0 %v190
    %1481 = vmatprep.subr.mxu0 0.0
    %1482 = vmatpush1.msra.mxu0 0.0
    %1483 = vmatprep.subr.mxu0 0.0
    %1484 = vmatpush1.msra.mxu0 0.0
    %1485 = vmatprep.subr.mxu0 0.0
    %1486 = vmatpush1.msra.mxu0 0.0
    %1487 = vmatprep.subr.mxu0 0.0
    %1488 = vmatpush1.msra.mxu0 0.0
    %1489 = vmatprep.subr.mxu0 0.0
    %1490 = vmatpush1.msra.mxu0 0.0
    %1491 = vmatprep.subr.mxu0 0.0
    %1492 = vmatpush1.msra.mxu0 0.0
    %1493 = vmatprep.subr.mxu0 0.0
    %1494 = vmatpush1.msra.mxu0 0.0
    %1495 = vmatprep.subr.mxu0 0.0
    %1496 = vmatpush1.msra.mxu0 0.0
    %1497 = vmatprep.subr.mxu0 0.0
    %1498 = vmatpush1.msra.mxu0 0.0
    %1499 = vmatprep.subr.mxu0 0.0
    %1500 = vmatpush1.msra.mxu0 0.0
    %1501 = vmatprep.subr.mxu0 0.0
    %1502 = vmatpush1.msra.mxu0 0.0
    %1503 = vmatprep.subr.mxu0 0.0
    %1504 = vmatpush1.msra.mxu0 0.0
    %1505 = vmatprep.subr.mxu0 0.0
    %1506 = vmatpush1.msra.mxu0 0.0
    %1507 = vmatprep.subr.mxu0 0.0
    %1508 = vmatpush1.msra.mxu0 0.0
    %1509 = vmatprep.subr.mxu0 0.0
    %1510 = vmatpush1.msra.mxu0 0.0
    %1511 = vmatprep.subr.mxu0 0.0
    %1512 = vmatpush1.msra.mxu0 0.0
    %1513 = vmatprep.subr.mxu0 0.0
    %1514 = vmatpush1.msra.mxu0 0.0
    %1515 = vmatprep.subr.mxu0 0.0
    %1516 = vmatpush1.msra.mxu0 0.0
    %1517 = vmatprep.subr.mxu0 0.0
    %1518 = vmatpush1.msra.mxu0 0.0
    %1519 = vmatprep.subr.mxu0 0.0
    %1520 = vmatpush1.msra.mxu0 0.0
    %1521 = vmatprep.subr.mxu0 0.0
    %1522 = vmatpush1.msra.mxu0 0.0
    %1523 = vmatprep.subr.mxu0 0.0
    %1524 = vmatpush1.msra.mxu0 0.0
    %1525 = vmatprep.subr.mxu0 0.0
    %1526 = vmatpush1.msra.mxu0 0.0
    %1527 = vmatprep.subr.mxu0 0.0
    %1528 = vmatpush1.msra.mxu0 0.0
    %1529 = vmatprep.subr.mxu0 0.0
    %1530 = vmatpush1.msra.mxu0 0.0
    %1531 = vmatprep.subr.mxu0 0.0
    %1532 = vmatpush1.msra.mxu0 0.0
    %1533 = vmatprep.subr.mxu0 0.0
    %1534 = vmatpush1.msra.mxu0 0.0
    %1535 = vmatprep.subr.mxu0 0.0
    %1536 = vmatpush1.msra.mxu0 0.0
    %1537 = vmatprep.subr.mxu0 0.0
    %1538 = vmatpush1.msra.mxu0 0.0
    %1539 = vmatprep.subr.mxu0 0.0
    %1540 = vmatpush1.msra.mxu0 0.0
    %1541 = vmatprep.subr.mxu0 0.0
    %1542 = vmatpush1.msra.mxu0 0.0
    %1543 = vmatprep.mubr.f32.mxu0 0.0
    %1544 = vmatmul.mubr.f32.gmra.mrb[0].mxu0 %v1477
    %v1545 = vpop.f32.mrb[0].mxu0
    %v1546 = vadd.f32 0.0, %v1545
    %v1547 = vpop.f32.mrb[0].mxu0
    %1548 = vdwg.mxu0
    %v1550 = vsel %vm196, %v1308, 0
    %1552 = vmatprep.subr.mxu0 0.0
    %1553 = vmatpush1.msra.mxu0 %v189
    %1554 = vmatprep.subr.mxu0 0.0
    %1555 = vmatpush1.msra.mxu0 0.0
    %1556 = vmatprep.subr.mxu0 0.0
    %1557 = vmatpush1.msra.mxu0 0.0
    %1558 = vmatprep.subr.mxu0 0.0
    %1559 = vmatpush1.msra.mxu0 0.0
    %1560 = vmatprep.subr.mxu0 0.0
    %1561 = vmatpush1.msra.mxu0 0.0
    %1562 = vmatprep.subr.mxu0 0.0
    %1563 = vmatpush1.msra.mxu0 0.0
    %1564 = vmatprep.subr.mxu0 0.0
    %1565 = vmatpush1.msra.mxu0 0.0
    %1566 = vmatprep.subr.mxu0 0.0
    %1567 = vmatpush1.msra.mxu0 0.0
    %1568 = vmatprep.subr.mxu0 0.0
    %1569 = vmatpush1.msra.mxu0 0.0
    %1570 = vmatprep.subr.mxu0 0.0
    %1571 = vmatpush1.msra.mxu0 0.0
    %1572 = vmatprep.subr.mxu0 0.0
    %1573 = vmatpush1.msra.mxu0 0.0
    %1574 = vmatprep.subr.mxu0 0.0
    %1575 = vmatpush1.msra.mxu0 0.0
    %1576 = vmatprep.subr.mxu0 0.0
    %1577 = vmatpush1.msra.mxu0 0.0
    %1578 = vmatprep.subr.mxu0 0.0
    %1579 = vmatpush1.msra.mxu0 0.0
    %1580 = vmatprep.subr.mxu0 0.0
    %1581 = vmatpush1.msra.mxu0 0.0
    %1582 = vmatprep.subr.mxu0 0.0
    %1583 = vmatpush1.msra.mxu0 0.0
    %1584 = vmatprep.subr.mxu0 0.0
    %1585 = vmatpush1.msra.mxu0 0.0
    %1586 = vmatprep.subr.mxu0 0.0
    %1587 = vmatpush1.msra.mxu0 0.0
    %1588 = vmatprep.subr.mxu0 0.0
    %1589 = vmatpush1.msra.mxu0 0.0
    %1590 = vmatprep.subr.mxu0 0.0
    %1591 = vmatpush1.msra.mxu0 0.0
    %1592 = vmatprep.subr.mxu0 0.0
    %1593 = vmatpush1.msra.mxu0 0.0
    %1594 = vmatprep.subr.mxu0 0.0
    %1595 = vmatpush1.msra.mxu0 0.0
    %1596 = vmatprep.subr.mxu0 0.0
    %1597 = vmatpush1.msra.mxu0 0.0
    %1598 = vmatprep.subr.mxu0 0.0
    %1599 = vmatpush1.msra.mxu0 0.0
    %1600 = vmatprep.subr.mxu0 0.0
    %1601 = vmatpush1.msra.mxu0 0.0
    %1602 = vmatprep.subr.mxu0 0.0
    %1603 = vmatpush1.msra.mxu0 0.0
    %1604 = vmatprep.subr.mxu0 0.0
    %1605 = vmatpush1.msra.mxu0 0.0
    %1606 = vmatprep.subr.mxu0 0.0
    %1607 = vmatpush1.msra.mxu0 0.0
    %1608 = vmatprep.subr.mxu0 0.0
    %1609 = vmatpush1.msra.mxu0 0.0
    %1610 = vmatprep.subr.mxu0 0.0
    %1611 = vmatpush1.msra.mxu0 0.0
    %1612 = vmatprep.subr.mxu0 0.0
    %1613 = vmatpush1.msra.mxu0 0.0
    %1614 = vmatprep.subr.mxu0 0.0
    %1615 = vmatpush1.msra.mxu0 0.0
    %1616 = vmatprep.mubr.f32.mxu0 0.0
    %1617 = vmatmul.mubr.f32.gmra.mrb[0].mxu0 %v1550
    %v1618 = vpop.f32.mrb[0].mxu0
    %v1619 = vadd.f32 %v1546, %v1618
    %v1620 = vpop.f32.mrb[0].mxu0
    %1621 = vdwg.mxu0
    %1622 = vrot.lane.b32.xlu0 %v186, 112
    %v1623 = vpop.permute.xlu0 %1622
    %1624 = vrot.lane.b32.xlu0 %v186, 80
    %v1625 = vpop.permute.xlu0 %1624
    %v1626 = vsel %vm196, %v1623, 0
    %v1628 = vsel %vm196, %v1625, 0
    %1630 = vmatprep.subr.mxu0 0.0
    %1631 = vmatpush1.xpose.msra.mxu0 %v1628
    %1632 = vmatprep.subr.mxu0 0.0
    %1633 = vmatpush1.xpose.msra.mxu0 0.0
    %1634 = vmatprep.subr.mxu0 0.0
    %1635 = vmatpush1.xpose.msra.mxu0 0.0
    %1636 = vmatprep.subr.mxu0 0.0
    %1637 = vmatpush1.xpose.msra.mxu0 0.0
    %1638 = vmatprep.subr.mxu0 0.0
    %1639 = vmatpush1.xpose.msra.mxu0 0.0
    %1640 = vmatprep.subr.mxu0 0.0
    %1641 = vmatpush1.xpose.msra.mxu0 0.0
    %1642 = vmatprep.subr.mxu0 0.0
    %1643 = vmatpush1.xpose.msra.mxu0 0.0
    %1644 = vmatprep.subr.mxu0 0.0
    %1645 = vmatpush1.xpose.msra.mxu0 0.0
    %1646 = vmatprep.subr.mxu0 0.0
    %1647 = vmatpush1.xpose.msra.mxu0 0.0
    %1648 = vmatprep.subr.mxu0 0.0
    %1649 = vmatpush1.xpose.msra.mxu0 0.0
    %1650 = vmatprep.subr.mxu0 0.0
    %1651 = vmatpush1.xpose.msra.mxu0 0.0
    %1652 = vmatprep.subr.mxu0 0.0
    %1653 = vmatpush1.xpose.msra.mxu0 0.0
    %1654 = vmatprep.subr.mxu0 0.0
    %1655 = vmatpush1.xpose.msra.mxu0 0.0
    %1656 = vmatprep.subr.mxu0 0.0
    %1657 = vmatpush1.xpose.msra.mxu0 0.0
    %1658 = vmatprep.subr.mxu0 0.0
    %1659 = vmatpush1.xpose.msra.mxu0 0.0
    %1660 = vmatprep.subr.mxu0 0.0
    %1661 = vmatpush1.xpose.msra.mxu0 0.0
    %1662 = vmatprep.subr.mxu0 0.0
    %1663 = vmatpush1.xpose.msra.mxu0 0.0
    %1664 = vmatprep.subr.mxu0 0.0
    %1665 = vmatpush1.xpose.msra.mxu0 0.0
    %1666 = vmatprep.subr.mxu0 0.0
    %1667 = vmatpush1.xpose.msra.mxu0 0.0
    %1668 = vmatprep.subr.mxu0 0.0
    %1669 = vmatpush1.xpose.msra.mxu0 0.0
    %1670 = vmatprep.subr.mxu0 0.0
    %1671 = vmatpush1.xpose.msra.mxu0 0.0
    %1672 = vmatprep.subr.mxu0 0.0
    %1673 = vmatpush1.xpose.msra.mxu0 0.0
    %1674 = vmatprep.subr.mxu0 0.0
    %1675 = vmatpush1.xpose.msra.mxu0 0.0
    %1676 = vmatprep.subr.mxu0 0.0
    %1677 = vmatpush1.xpose.msra.mxu0 0.0
    %1678 = vmatprep.subr.mxu0 0.0
    %1679 = vmatpush1.xpose.msra.mxu0 0.0
    %1680 = vmatprep.subr.mxu0 0.0
    %1681 = vmatpush1.xpose.msra.mxu0 0.0
    %1682 = vmatprep.subr.mxu0 0.0
    %1683 = vmatpush1.xpose.msra.mxu0 0.0
    %1684 = vmatprep.subr.mxu0 0.0
    %1685 = vmatpush1.xpose.msra.mxu0 0.0
    %1686 = vmatprep.subr.mxu0 0.0
    %1687 = vmatpush1.xpose.msra.mxu0 0.0
    %1688 = vmatprep.subr.mxu0 0.0
    %1689 = vmatpush1.xpose.msra.mxu0 0.0
    %1690 = vmatprep.subr.mxu0 0.0
    %1691 = vmatpush1.xpose.msra.mxu0 0.0
    %1692 = vmatprep.subr.mxu0 0.0
    %1693 = vmatpush1.xpose.msra.mxu0 0.0
    %1694 = vmatprep.mubr.f32.mxu0 0.0
    %1695 = vmatmul.mubr.f32.gmra.mrb[0].mxu0 %v1626
    %v1696 = vpop.f32.mrb[0].mxu0
    %v1697 = vadd.f32 0.0, %v1696
    %v1698 = vpop.f32.mrb[0].mxu0
    %1699 = vdwg.mxu0
    %v1700 = vsel %vm196, %v1697, -inf
    %1701 = vmax.xlane.f32.xlu0 %v1700
    %v1702 = vpop.xlane.xlu0 %1701
    %v1703 = vsub.f32 %v1697, %v1702
    %v1704 = vmul.f32 %v1703, 1.442695
    %v1705 = vpow.pop %v1704
    %v1706 = vsel %vm196, %v1705, 0.0
    %1707 = vadd.xlane.f32.xlu0 %v1706
    %v1708 = vpop.xlane.xlu0 %1707
    %v1709 = vrcp.pop %v1708
    %v1710 = vmul.f32 %v1705, %v1709
    %1711 = vrot.lane.b32.xlu0 %v186, 48
    %v1712 = vpop.permute.xlu0 %1711
    %v1715 = vsel %vm196, %v1710, 0
    %1717 = vmatprep.subr.mxu0 0.0
    %1718 = vmatpush1.msra.mxu0 %v1712
    %1719 = vmatprep.subr.mxu0 0.0
    %1720 = vmatpush1.msra.mxu0 0.0
    %1721 = vmatprep.subr.mxu0 0.0
    %1722 = vmatpush1.msra.mxu0 0.0
    %1723 = vmatprep.subr.mxu0 0.0
    %1724 = vmatpush1.msra.mxu0 0.0
    %1725 = vmatprep.subr.mxu0 0.0
    %1726 = vmatpush1.msra.mxu0 0.0
    %1727 = vmatprep.subr.mxu0 0.0
    %1728 = vmatpush1.msra.mxu0 0.0
    %1729 = vmatprep.subr.mxu0 0.0
    %1730 = vmatpush1.msra.mxu0 0.0
    %1731 = vmatprep.subr.mxu0 0.0
    %1732 = vmatpush1.msra.mxu0 0.0
    %1733 = vmatprep.subr.mxu0 0.0
    %1734 = vmatpush1.msra.mxu0 0.0
    %1735 = vmatprep.subr.mxu0 0.0
    %1736 = vmatpush1.msra.mxu0 0.0
    %1737 = vmatprep.subr.mxu0 0.0
    %1738 = vmatpush1.msra.mxu0 0.0
    %1739 = vmatprep.subr.mxu0 0.0
    %1740 = vmatpush1.msra.mxu0 0.0
    %1741 = vmatprep.subr.mxu0 0.0
    %1742 = vmatpush1.msra.mxu0 0.0
    %1743 = vmatprep.subr.mxu0 0.0
    %1744 = vmatpush1.msra.mxu0 0.0
    %1745 = vmatprep.subr.mxu0 0.0
    %1746 = vmatpush1.msra.mxu0 0.0
    %1747 = vmatprep.subr.mxu0 0.0
    %1748 = vmatpush1.msra.mxu0 0.0
    %1749 = vmatprep.subr.mxu0 0.0
    %1750 = vmatpush1.msra.mxu0 0.0
    %1751 = vmatprep.subr.mxu0 0.0
    %1752 = vmatpush1.msra.mxu0 0.0
    %1753 = vmatprep.subr.mxu0 0.0
    %1754 = vmatpush1.msra.mxu0 0.0
    %1755 = vmatprep.subr.mxu0 0.0
    %1756 = vmatpush1.msra.mxu0 0.0
    %1757 = vmatprep.subr.mxu0 0.0
    %1758 = vmatpush1.msra.mxu0 0.0
    %1759 = vmatprep.subr.mxu0 0.0
    %1760 = vmatpush1.msra.mxu0 0.0
    %1761 = vmatprep.subr.mxu0 0.0
    %1762 = vmatpush1.msra.mxu0 0.0
    %1763 = vmatprep.subr.mxu0 0.0
    %1764 = vmatpush1.msra.mxu0 0.0
    %1765 = vmatprep.subr.mxu0 0.0
    %1766 = vmatpush1.msra.mxu0 0.0
    %1767 = vmatprep.subr.mxu0 0.0
    %1768 = vmatpush1.msra.mxu0 0.0
    %1769 = vmatprep.subr.mxu0 0.0
    %1770 = vmatpush1.msra.mxu0 0.0
    %1771 = vmatprep.subr.mxu0 0.0
    %1772 = vmatpush1.msra.mxu0 0.0
    %1773 = vmatprep.subr.mxu0 0.0
    %1774 = vmatpush1.msra.mxu0 0.0
    %1775 = vmatprep.subr.mxu0 0.0
    %1776 = vmatpush1.msra.mxu0 0.0
    %1777 = vmatprep.subr.mxu0 0.0
    %1778 = vmatpush1.msra.mxu0 0.0
    %1779 = vmatprep.subr.mxu0 0.0
    %1780 = vmatpush1.msra.mxu0 0.0
    %1781 = vmatprep.mubr.f32.mxu0 0.0
    %1782 = vmatmul.mubr.f32.gmra.mrb[0].mxu0 %v1715
    %v1783 = vpop.f32.mrb[0].mxu0
    %v1784 = vadd.f32 0.0, %v1783
    %v1785 = vpop.f32.mrb[0].mxu0
    %1786 = vdwg.mxu0
    %v1788 = vsel %vm196, %v1784, 0
    %1790 = vmatprep.subr.mxu0 0.0
    %1791 = vmatpush1.msra.mxu0 %v191
    %1792 = vmatprep.subr.mxu0 0.0
    %1793 = vmatpush1.msra.mxu0 0.0
    %1794 = vmatprep.subr.mxu0 0.0
    %1795 = vmatpush1.msra.mxu0 0.0
    %1796 = vmatprep.subr.mxu0 0.0
    %1797 = vmatpush1.msra.mxu0 0.0
    %1798 = vmatprep.subr.mxu0 0.0
    %1799 = vmatpush1.msra.mxu0 0.0
    %1800 = vmatprep.subr.mxu0 0.0
    %1801 = vmatpush1.msra.mxu0 0.0
    %1802 = vmatprep.subr.mxu0 0.0
    %1803 = vmatpush1.msra.mxu0 0.0
    %1804 = vmatprep.subr.mxu0 0.0
    %1805 = vmatpush1.msra.mxu0 0.0
    %1806 = vmatprep.subr.mxu0 0.0
    %1807 = vmatpush1.msra.mxu0 0.0
    %1808 = vmatprep.subr.mxu0 0.0
    %1809 = vmatpush1.msra.mxu0 0.0
    %1810 = vmatprep.subr.mxu0 0.0
    %1811 = vmatpush1.msra.mxu0 0.0
    %1812 = vmatprep.subr.mxu0 0.0
    %1813 = vmatpush1.msra.mxu0 0.0
    %1814 = vmatprep.subr.mxu0 0.0
    %1815 = vmatpush1.msra.mxu0 0.0
    %1816 = vmatprep.subr.mxu0 0.0
    %1817 = vmatpush1.msra.mxu0 0.0
    %1818 = vmatprep.subr.mxu0 0.0
    %1819 = vmatpush1.msra.mxu0 0.0
    %1820 = vmatprep.subr.mxu0 0.0
    %1821 = vmatpush1.msra.mxu0 0.0
    %1822 = vmatprep.subr.mxu0 0.0
    %1823 = vmatpush1.msra.mxu0 0.0
    %1824 = vmatprep.subr.mxu0 0.0
    %1825 = vmatpush1.msra.mxu0 0.0
    %1826 = vmatprep.subr.mxu0 0.0
    %1827 = vmatpush1.msra.mxu0 0.0
    %1828 = vmatprep.subr.mxu0 0.0
    %1829 = vmatpush1.msra.mxu0 0.0
    %1830 = vmatprep.subr.mxu0 0.0
    %1831 = vmatpush1.msra.mxu0 0.0
    %1832 = vmatprep.subr.mxu0 0.0
    %1833 = vmatpush1.msra.mxu0 0.0
    %1834 = vmatprep.subr.mxu0 0.0
    %1835 = vmatpush1.msra.mxu0 0.0
    %1836 = vmatprep.subr.mxu0 0.0
    %1837 = vmatpush1.msra.mxu0 0.0
    %1838 = vmatprep.subr.mxu0 0.0
    %1839 = vmatpush1.msra.mxu0 0.0
    %1840 = vmatprep.subr.mxu0 0.0
    %1841 = vmatpush1.msra.mxu0 0.0
    %1842 = vmatprep.subr.mxu0 0.0
    %1843 = vmatpush1.msra.mxu0 0.0
    %1844 = vmatprep.subr.mxu0 0.0
    %1845 = vmatpush1.msra.mxu0 0.0
    %1846 = vmatprep.subr.mxu0 0.0
    %1847 = vmatpush1.msra.mxu0 0.0
    %1848 = vmatprep.subr.mxu0 0.0
    %1849 = vmatpush1.msra.mxu0 0.0
    %1850 = vmatprep.subr.mxu0 0.0
    %1851 = vmatpush1.msra.mxu0 0.0
    %1852 = vmatprep.subr.mxu0 0.0
    %1853 = vmatpush1.msra.mxu0 0.0
    %1854 = vmatprep.mubr.f32.mxu0 0.0
    %1855 = vmatmul.mubr.f32.gmra.mrb[0].mxu0 %v1788
    %v1856 = vpop.f32.mrb[0].mxu0
    %v1857 = vadd.f32 0.0, %v1856
    %v1858 = vpop.f32.mrb[0].mxu0
    %1859 = vdwg.mxu0
    %v1860 = vadd.f32 %v1619, %v1857
    %1861 = vrot.lane.b32.xlu0 %v186, 104
    %v1862 = vpop.permute.xlu0 %1861
    %1863 = vrot.lane.b32.xlu0 %v186, 72
    %v1864 = vpop.permute.xlu0 %1863
    %v1865 = vsel %vm196, %v1862, 0
    %v1867 = vsel %vm196, %v1864, 0
    %1869 = vmatprep.subr.mxu0 0.0
    %1870 = vmatpush1.xpose.msra.mxu0 %v1867
    %1871 = vmatprep.subr.mxu0 0.0
    %1872 = vmatpush1.xpose.msra.mxu0 0.0
    %1873 = vmatprep.subr.mxu0 0.0
    %1874 = vmatpush1.xpose.msra.mxu0 0.0
    %1875 = vmatprep.subr.mxu0 0.0
    %1876 = vmatpush1.xpose.msra.mxu0 0.0
    %1877 = vmatprep.subr.mxu0 0.0
    %1878 = vmatpush1.xpose.msra.mxu0 0.0
    %1879 = vmatprep.subr.mxu0 0.0
    %1880 = vmatpush1.xpose.msra.mxu0 0.0
    %1881 = vmatprep.subr.mxu0 0.0
    %1882 = vmatpush1.xpose.msra.mxu0 0.0
    %1883 = vmatprep.subr.mxu0 0.0
    %1884 = vmatpush1.xpose.msra.mxu0 0.0
    %1885 = vmatprep.subr.mxu0 0.0
    %1886 = vmatpush1.xpose.msra.mxu0 0.0
    %1887 = vmatprep.subr.mxu0 0.0
    %1888 = vmatpush1.xpose.msra.mxu0 0.0
    %1889 = vmatprep.subr.mxu0 0.0
    %1890 = vmatpush1.xpose.msra.mxu0 0.0
    %1891 = vmatprep.subr.mxu0 0.0
    %1892 = vmatpush1.xpose.msra.mxu0 0.0
    %1893 = vmatprep.subr.mxu0 0.0
    %1894 = vmatpush1.xpose.msra.mxu0 0.0
    %1895 = vmatprep.subr.mxu0 0.0
    %1896 = vmatpush1.xpose.msra.mxu0 0.0
    %1897 = vmatprep.subr.mxu0 0.0
    %1898 = vmatpush1.xpose.msra.mxu0 0.0
    %1899 = vmatprep.subr.mxu0 0.0
    %1900 = vmatpush1.xpose.msra.mxu0 0.0
    %1901 = vmatprep.subr.mxu0 0.0
    %1902 = vmatpush1.xpose.msra.mxu0 0.0
    %1903 = vmatprep.subr.mxu0 0.0
    %1904 = vmatpush1.xpose.msra.mxu0 0.0
    %1905 = vmatprep.subr.mxu0 0.0
    %1906 = vmatpush1.xpose.msra.mxu0 0.0
    %1907 = vmatprep.subr.mxu0 0.0
    %1908 = vmatpush1.xpose.msra.mxu0 0.0
    %1909 = vmatprep.subr.mxu0 0.0
    %1910 = vmatpush1.xpose.msra.mxu0 0.0
    %1911 = vmatprep.subr.mxu0 0.0
    %1912 = vmatpush1.xpose.msra.mxu0 0.0
    %1913 = vmatprep.subr.mxu0 0.0
    %1914 = vmatpush1.xpose.msra.mxu0 0.0
    %1915 = vmatprep.subr.mxu0 0.0
    %1916 = vmatpush1.xpose.msra.mxu0 0.0
    %1917 = vmatprep.subr.mxu0 0.0
    %1918 = vmatpush1.xpose.msra.mxu0 0.0
    %1919 = vmatprep.subr.mxu0 0.0
    %1920 = vmatpush1.xpose.msra.mxu0 0.0
    %1921 = vmatprep.subr.mxu0 0.0
    %1922 = vmatpush1.xpose.msra.mxu0 0.0
    %1923 = vmatprep.subr.mxu0 0.0
    %1924 = vmatpush1.xpose.msra.mxu0 0.0
    %1925 = vmatprep.subr.mxu0 0.0
    %1926 = vmatpush1.xpose.msra.mxu0 0.0
    %1927 = vmatprep.subr.mxu0 0.0
    %1928 = vmatpush1.xpose.msra.mxu0 0.0
    %1929 = vmatprep.subr.mxu0 0.0
    %1930 = vmatpush1.xpose.msra.mxu0 0.0
    %1931 = vmatprep.subr.mxu0 0.0
    %1932 = vmatpush1.xpose.msra.mxu0 0.0
    %1933 = vmatprep.mubr.f32.mxu0 0.0
    %1934 = vmatmul.mubr.f32.gmra.mrb[0].mxu0 %v1865
    %v1935 = vpop.f32.mrb[0].mxu0
    %v1936 = vadd.f32 0.0, %v1935
    %v1937 = vpop.f32.mrb[0].mxu0
    %1938 = vdwg.mxu0
    %v1939 = vsel %vm196, %v1936, -inf
    %1940 = vmax.xlane.f32.xlu0 %v1939
    %v1941 = vpop.xlane.xlu0 %1940
    %v1942 = vsub.f32 %v1936, %v1941
    %v1943 = vmul.f32 %v1942, 1.442695
    %v1944 = vpow.pop %v1943
    %v1945 = vsel %vm196, %v1944, 0.0
    %1946 = vadd.xlane.f32.xlu0 %v1945
    %v1947 = vpop.xlane.xlu0 %1946
    %v1948 = vrcp.pop %v1947
    %v1949 = vmul.f32 %v1944, %v1948
    %1950 = vrot.lane.b32.xlu0 %v186, 40
    %v1951 = vpop.permute.xlu0 %1950
    %v1954 = vsel %vm196, %v1949, 0
    %1956 = vmatprep.subr.mxu0 0.0
    %1957 = vmatpush1.msra.mxu0 %v1951
    %1958 = vmatprep.subr.mxu0 0.0
    %1959 = vmatpush1.msra.mxu0 0.0
    %1960 = vmatprep.subr.mxu0 0.0
    %1961 = vmatpush1.msra.mxu0 0.0
    %1962 = vmatprep.subr.mxu0 0.0
    %1963 = vmatpush1.msra.mxu0 0.0
    %1964 = vmatprep.subr.mxu0 0.0
    %1965 = vmatpush1.msra.mxu0 0.0
    %1966 = vmatprep.subr.mxu0 0.0
    %1967 = vmatpush1.msra.mxu0 0.0
    %1968 = vmatprep.subr.mxu0 0.0
    %1969 = vmatpush1.msra.mxu0 0.0
    %1970 = vmatprep.subr.mxu0 0.0
    %1971 = vmatpush1.msra.mxu0 0.0
    %1972 = vmatprep.subr.mxu0 0.0
    %1973 = vmatpush1.msra.mxu0 0.0
    %1974 = vmatprep.subr.mxu0 0.0
    %1975 = vmatpush1.msra.mxu0 0.0
    %1976 = vmatprep.subr.mxu0 0.0
    %1977 = vmatpush1.msra.mxu0 0.0
    %1978 = vmatprep.subr.mxu0 0.0
    %1979 = vmatpush1.msra.mxu0 0.0
    %1980 = vmatprep.subr.mxu0 0.0
    %1981 = vmatpush1.msra.mxu0 0.0
    %1982 = vmatprep.subr.mxu0 0.0
    %1983 = vmatpush1.msra.mxu0 0.0
    %1984 = vmatprep.subr.mxu0 0.0
    %1985 = vmatpush1.msra.mxu0 0.0
    %1986 = vmatprep.subr.mxu0 0.0
    %1987 = vmatpush1.msra.mxu0 0.0
    %1988 = vmatprep.subr.mxu0 0.0
    %1989 = vmatpush1.msra.mxu0 0.0
    %1990 = vmatprep.subr.mxu0 0.0
    %1991 = vmatpush1.msra.mxu0 0.0
    %1992 = vmatprep.subr.mxu0 0.0
    %1993 = vmatpush1.msra.mxu0 0.0
    %1994 = vmatprep.subr.mxu0 0.0
    %1995 = vmatpush1.msra.mxu0 0.0
    %1996 = vmatprep.subr.mxu0 0.0
    %1997 = vmatpush1.msra.mxu0 0.0
    %1998 = vmatprep.subr.mxu0 0.0
    %1999 = vmatpush1.msra.mxu0 0.0
    %2000 = vmatprep.subr.mxu0 0.0
    %2001 = vmatpush1.msra.mxu0 0.0
    %2002 = vmatprep.subr.mxu0 0.0
    %2003 = vmatpush1.msra.mxu0 0.0
    %2004 = vmatprep.subr.mxu0 0.0
    %2005 = vmatpush1.msra.mxu0 0.0
    %2006 = vmatprep.subr.mxu0 0.0
    %2007 = vmatpush1.msra.mxu0 0.0
    %2008 = vmatprep.subr.mxu0 0.0
    %2009 = vmatpush1.msra.mxu0 0.0
    %2010 = vmatprep.subr.mxu0 0.0
    %2011 = vmatpush1.msra.mxu0 0.0
    %2012 = vmatprep.subr.mxu0 0.0
    %2013 = vmatpush1.msra.mxu0 0.0
    %2014 = vmatprep.subr.mxu0 0.0
    %2015 = vmatpush1.msra.mxu0 0.0
    %2016 = vmatprep.subr.mxu0 0.0
    %2017 = vmatpush1.msra.mxu0 0.0
    %2018 = vmatprep.subr.mxu0 0.0
    %2019 = vmatpush1.msra.mxu0 0.0
    %2020 = vmatprep.mubr.f32.mxu0 0.0
    %2021 = vmatmul.mubr.f32.gmra.mrb[0].mxu0 %v1954
    %v2022 = vpop.f32.mrb[0].mxu0
    %v2023 = vadd.f32 0.0, %v2022
    %v2024 = vpop.f32.mrb[0].mxu0
    %2025 = vdwg.mxu0
    %v2027 = vsel %vm196, %v2023, 0
    %2029 = vmatprep.subr.mxu0 0.0
    %2030 = vmatpush1.msra.mxu0 %v192
    %2031 = vmatprep.subr.mxu0 0.0
    %2032 = vmatpush1.msra.mxu0 0.0
    %2033 = vmatprep.subr.mxu0 0.0
    %2034 = vmatpush1.msra.mxu0 0.0
    %2035 = vmatprep.subr.mxu0 0.0
    %2036 = vmatpush1.msra.mxu0 0.0
    %2037 = vmatprep.subr.mxu0 0.0
    %2038 = vmatpush1.msra.mxu0 0.0
    %2039 = vmatprep.subr.mxu0 0.0
    %2040 = vmatpush1.msra.mxu0 0.0
    %2041 = vmatprep.subr.mxu0 0.0
    %2042 = vmatpush1.msra.mxu0 0.0
    %2043 = vmatprep.subr.mxu0 0.0
    %2044 = vmatpush1.msra.mxu0 0.0
    %2045 = vmatprep.subr.mxu0 0.0
    %2046 = vmatpush1.msra.mxu0 0.0
    %2047 = vmatprep.subr.mxu0 0.0
    %2048 = vmatpush1.msra.mxu0 0.0
    %2049 = vmatprep.subr.mxu0 0.0
    %2050 = vmatpush1.msra.mxu0 0.0
    %2051 = vmatprep.subr.mxu0 0.0
    %2052 = vmatpush1.msra.mxu0 0.0
    %2053 = vmatprep.subr.mxu0 0.0
    %2054 = vmatpush1.msra.mxu0 0.0
    %2055 = vmatprep.subr.mxu0 0.0
    %2056 = vmatpush1.msra.mxu0 0.0
    %2057 = vmatprep.subr.mxu0 0.0
    %2058 = vmatpush1.msra.mxu0 0.0
    %2059 = vmatprep.subr.mxu0 0.0
    %2060 = vmatpush1.msra.mxu0 0.0
    %2061 = vmatprep.subr.mxu0 0.0
    %2062 = vmatpush1.msra.mxu0 0.0
    %2063 = vmatprep.subr.mxu0 0.0
    %2064 = vmatpush1.msra.mxu0 0.0
    %2065 = vmatprep.subr.mxu0 0.0
    %2066 = vmatpush1.msra.mxu0 0.0
    %2067 = vmatprep.subr.mxu0 0.0
    %2068 = vmatpush1.msra.mxu0 0.0
    %2069 = vmatprep.subr.mxu0 0.0
    %2070 = vmatpush1.msra.mxu0 0.0
    %2071 = vmatprep.subr.mxu0 0.0
    %2072 = vmatpush1.msra.mxu0 0.0
    %2073 = vmatprep.subr.mxu0 0.0
    %2074 = vmatpush1.msra.mxu0 0.0
    %2075 = vmatprep.subr.mxu0 0.0
    %2076 = vmatpush1.msra.mxu0 0.0
    %2077 = vmatprep.subr.mxu0 0.0
    %2078 = vmatpush1.msra.mxu0 0.0
    %2079 = vmatprep.subr.mxu0 0.0
    %2080 = vmatpush1.msra.mxu0 0.0
    %2081 = vmatprep.subr.mxu0 0.0
    %2082 = vmatpush1.msra.mxu0 0.0
    %2083 = vmatprep.subr.mxu0 0.0
    %2084 = vmatpush1.msra.mxu0 0.0
    %2085 = vmatprep.subr.mxu0 0.0
    %2086 = vmatpush1.msra.mxu0 0.0
    %2087 = vmatprep.subr.mxu0 0.0
    %2088 = vmatpush1.msra.mxu0 0.0
    %2089 = vmatprep.subr.mxu0 0.0
    %2090 = vmatpush1.msra.mxu0 0.0
    %2091 = vmatprep.subr.mxu0 0.0
    %2092 = vmatpush1.msra.mxu0 0.0
    %2093 = vmatprep.mubr.f32.mxu0 0.0
    %2094 = vmatmul.mubr.f32.gmra.mrb[0].mxu0 %v2027
    %v2095 = vpop.f32.mrb[0].mxu0
    %v2096 = vadd.f32 0.0, %v2095
    %v2097 = vpop.f32.mrb[0].mxu0
    %2098 = vdwg.mxu0
    %v2099 = vadd.f32 %v1860, %v2096
    %v2100 = vld [vmem:[%s4] sm:$0x1]
    %v2102 = vlaneseq
    %v2103 = vshrl.u32 %v2102, 7
    %v2104 = vsub.s32 0, %v2103
    %v2105 = vrot.slane %v2100, %v2104
    %v2107 = vadd.f32 %v1146, %v2105
    %v2108 = vadd.f32 %v2099, %v2105
    %v2109 = vsel %vm107, %v2107, 0.0
    %2110 = vadd.xlane.f32.xlu0 %v2109
    %v2111 = vpop.xlane.xlu0 %2110
    %v2112 = vsel %vm107, %v2108, 0.0
    %2113 = vadd.xlane.f32.xlu0 %v2112
    %v2114 = vpop.xlane.xlu0 %2113
    %v2115 = vrcp.pop 32.0
    %v2116 = vmul.f32 %v2111, %v2115
    %v2117 = vmul.f32 %v2114, %v2115
    %v2118 = vsub.f32 %v2107, %v2116
    %v2119 = vsub.f32 %v2108, %v2117
    %v2120 = vmul.f32 %v2118, %v2118
    %v2121 = vmul.f32 %v2119, %v2119
    %v2122 = vsel %vm107, %v2120, 0.0
    %2123 = vadd.xlane.f32.xlu0 %v2122
    %v2124 = vpop.xlane.xlu0 %2123
    %v2125 = vsel %vm107, %v2121, 0.0
    %2126 = vadd.xlane.f32.xlu0 %v2125
    %v2127 = vpop.xlane.xlu0 %2126
    %v2128 = vmul.f32 %v2124, %v2115
    %v2129 = vmul.f32 %v2127, %v2115
    %v2130 = vadd.f32 %v2128, 1e-05
    %v2131 = vadd.f32 %v2129, 1e-05
    %v2132 = vrsqrt.pop %v2130
    %v2133 = vrsqrt.pop %v2131
    %v2134 = vmul.f32 %v2118, %v2132
    %v2135 = vmul.f32 %v2119, %v2133
    %v2136 = vld [vmem:[#allocation5] sm:$0x1]
    %v2138 = vlaneseq
    %v2139 = vshrl.u32 %v2138, 7
    %v2140 = vsub.s32 0, %v2139
    %v2141 = vrot.slane %v2136, %v2140
    %v2143 = vmul.f32 %v2134, %v2141
    %v2144 = vmul.f32 %v2135, %v2141
    %v2145 = vld [vmem:[#allocation7] sm:$0x1]
    %v2147 = vlaneseq
    %v2148 = vshrl.u32 %v2147, 7
    %v2149 = vsub.s32 0, %v2148
    %v2150 = vrot.slane %v2145, %v2149
    %v2152 = vadd.f32 %v2143, %v2150
    %v2153 = vadd.f32 %v2144, %v2150
    %v2154 = vld [vmem:[%s7] sm:$0xff]
    %v2155 = vld [vmem:[%s7 + $0x8] sm:$0xff]
    %v2156 = vld [vmem:[%s7 + $0x10] sm:$0xff]
    %v2157 = vld [vmem:[%s7 + $0x18] sm:$0xff]
    %v2158 = vld [vmem:[#allocation8] sm:$0x1]
    %v2160 = vlaneseq
    %v2161 = vshrl.u32 %v2160, 7
    %v2162 = vsub.s32 0, %v2161
    %v2163 = vrot.slane %v2158, %v2162
    %v2166 = vsel %vm107, %v2152, 0
    %v2169 = vsel %vm107, %v2153, 0
    %2171 = vmatprep.subr.mxu0 0.0
    %2172 = vmatpush1.msra.mxu0 %v2154
    %2173 = vmatprep.subr.mxu0 0.0
    %2174 = vmatpush1.msra.mxu0 %v2155
    %2175 = vmatprep.subr.mxu0 0.0
    %2176 = vmatpush1.msra.mxu0 %v2156
    %2177 = vmatprep.subr.mxu0 0.0
    %2178 = vmatpush1.msra.mxu0 %v2157
    %2179 = vmatprep.subr.mxu0 0.0
    %2180 = vmatpush1.msra.mxu0 0.0
    %2181 = vmatprep.subr.mxu0 0.0
    %2182 = vmatpush1.msra.mxu0 0.0
    %2183 = vmatprep.subr.mxu0 0.0
    %2184 = vmatpush1.msra.mxu0 0.0
    %2185 = vmatprep.subr.mxu0 0.0
    %2186 = vmatpush1.msra.mxu0 0.0
    %2187 = vmatprep.subr.mxu0 0.0
    %2188 = vmatpush1.msra.mxu0 0.0
    %2189 = vmatprep.subr.mxu0 0.0
    %2190 = vmatpush1.msra.mxu0 0.0
    %2191 = vmatprep.subr.mxu0 0.0
    %2192 = vmatpush1.msra.mxu0 0.0
    %2193 = vmatprep.subr.mxu0 0.0
    %2194 = vmatpush1.msra.mxu0 0.0
    %2195 = vmatprep.subr.mxu0 0.0
    %2196 = vmatpush1.msra.mxu0 0.0
    %2197 = vmatprep.subr.mxu0 0.0
    %2198 = vmatpush1.msra.mxu0 0.0
    %2199 = vmatprep.subr.mxu0 0.0
    %2200 = vmatpush1.msra.mxu0 0.0
    %2201 = vmatprep.subr.mxu0 0.0
    %2202 = vmatpush1.msra.mxu0 0.0
    %2203 = vmatprep.subr.mxu0 0.0
    %2204 = vmatpush1.msra.mxu0 0.0
    %2205 = vmatprep.subr.mxu0 0.0
    %2206 = vmatpush1.msra.mxu0 0.0
    %2207 = vmatprep.subr.mxu0 0.0
    %2208 = vmatpush1.msra.mxu0 0.0
    %2209 = vmatprep.subr.mxu0 0.0
    %2210 = vmatpush1.msra.mxu0 0.0
    %2211 = vmatprep.subr.mxu0 0.0
    %2212 = vmatpush1.msra.mxu0 0.0
    %2213 = vmatprep.subr.mxu0 0.0
    %2214 = vmatpush1.msra.mxu0 0.0
    %2215 = vmatprep.subr.mxu0 0.0
    %2216 = vmatpush1.msra.mxu0 0.0
    %2217 = vmatprep.subr.mxu0 0.0
    %2218 = vmatpush1.msra.mxu0 0.0
    %2219 = vmatprep.subr.mxu0 0.0
    %2220 = vmatpush1.msra.mxu0 0.0
    %2221 = vmatprep.subr.mxu0 0.0
    %2222 = vmatpush1.msra.mxu0 0.0
    %2223 = vmatprep.subr.mxu0 0.0
    %2224 = vmatpush1.msra.mxu0 0.0
    %2225 = vmatprep.subr.mxu0 0.0
    %2226 = vmatpush1.msra.mxu0 0.0
    %2227 = vmatprep.subr.mxu0 0.0
    %2228 = vmatpush1.msra.mxu0 0.0
    %2229 = vmatprep.subr.mxu0 0.0
    %2230 = vmatpush1.msra.mxu0 0.0
    %2231 = vmatprep.subr.mxu0 0.0
    %2232 = vmatpush1.msra.mxu0 0.0
    %2233 = vmatprep.subr.mxu0 0.0
    %2234 = vmatpush1.msra.mxu0 0.0
    %2235 = vmatprep.mubr.f32.mxu0 0.0
    %2236 = vmatmul.mubr.f32.gmra.mrb[0].mxu0 %v2166
    %v2237 = vpop.f32.mrb[0].mxu0
    %v2238 = vadd.f32 %v2163, %v2237
    %v2239 = vpop.f32.mrb[0].mxu0
    %2240 = vmatprep.mubr.f32.mxu0 0.0
    %2241 = vmatmul.mubr.f32.gmra.mrb[0].mxu0 %v2169
    %v2242 = vpop.f32.mrb[0].mxu0
    %v2243 = vadd.f32 %v2163, %v2242
    %v2244 = vpop.f32.mrb[0].mxu0
    %2245 = vdwg.mxu0
    %v2246 = vmax.f32 %v2238, 0.0
    %v2247 = vmax.f32 %v2243, 0.0
    %v2248 = vld [vmem:[%s9] sm:$0xff]
    %v2249 = vld [vmem:[%s9 + $0x8] sm:$0xff]
    %v2250 = vld [vmem:[%s9 + $0x10] sm:$0xff]
    %v2251 = vld [vmem:[%s9 + $0x18] sm:$0xff]
    %v2252 = vld [vmem:[%s9 + $0x20] sm:$0xff]
    %v2253 = vld [vmem:[%s9 + $0x28] sm:$0xff]
    %v2254 = vld [vmem:[%s9 + $0x30] sm:$0xff]
    %v2255 = vld [vmem:[%s9 + $0x38] sm:$0xff]
    %v2256 = vld [vmem:[%s10] sm:$0x1]
    %v2258 = vlaneseq
    %v2259 = vshrl.u32 %v2258, 7
    %v2260 = vsub.s32 0, %v2259
    %v2261 = vrot.slane %v2256, %v2260
    %vm2263 = vcmask 523264
    %v2265 = vsel %vm2263, %v2246, 0
    %v2268 = vsel %vm2263, %v2247, 0
    %2270 = vmatprep.subr.mxu0 0.0
    %2271 = vmatpush1.msra.mxu0 %v2248
    %2272 = vmatprep.subr.mxu0 0.0
    %2273 = vmatpush1.msra.mxu0 %v2249
    %2274 = vmatprep.subr.mxu0 0.0
    %2275 = vmatpush1.msra.mxu0 %v2250
    %2276 = vmatprep.subr.mxu0 0.0
    %2277 = vmatpush1.msra.mxu0 %v2251
    %2278 = vmatprep.subr.mxu0 0.0
    %2279 = vmatpush1.msra.mxu0 %v2252
    %2280 = vmatprep.subr.mxu0 0.0
    %2281 = vmatpush1.msra.mxu0 %v2253
    %2282 = vmatprep.subr.mxu0 0.0
    %2283 = vmatpush1.msra.mxu0 %v2254
    %2284 = vmatprep.subr.mxu0 0.0
    %2285 = vmatpush1.msra.mxu0 %v2255
    %2286 = vmatprep.subr.mxu0 0.0
    %2287 = vmatpush1.msra.mxu0 0.0
    %2288 = vmatprep.subr.mxu0 0.0
    %2289 = vmatpush1.msra.mxu0 0.0
    %2290 = vmatprep.subr.mxu0 0.0
    %2291 = vmatpush1.msra.mxu0 0.0
    %2292 = vmatprep.subr.mxu0 0.0
    %2293 = vmatpush1.msra.mxu0 0.0
    %2294 = vmatprep.subr.mxu0 0.0
    %2295 = vmatpush1.msra.mxu0 0.0
    %2296 = vmatprep.subr.mxu0 0.0
    %2297 = vmatpush1.msra.mxu0 0.0
    %2298 = vmatprep.subr.mxu0 0.0
    %2299 = vmatpush1.msra.mxu0 0.0
    %2300 = vmatprep.subr.mxu0 0.0
    %2301 = vmatpush1.msra.mxu0 0.0
    %2302 = vmatprep.subr.mxu0 0.0
    %2303 = vmatpush1.msra.mxu0 0.0
    %2304 = vmatprep.subr.mxu0 0.0
    %2305 = vmatpush1.msra.mxu0 0.0
    %2306 = vmatprep.subr.mxu0 0.0
    %2307 = vmatpush1.msra.mxu0 0.0
    %2308 = vmatprep.subr.mxu0 0.0
    %2309 = vmatpush1.msra.mxu0 0.0
    %2310 = vmatprep.subr.mxu0 0.0
    %2311 = vmatpush1.msra.mxu0 0.0
    %2312 = vmatprep.subr.mxu0 0.0
    %2313 = vmatpush1.msra.mxu0 0.0
    %2314 = vmatprep.subr.mxu0 0.0
    %2315 = vmatpush1.msra.mxu0 0.0
    %2316 = vmatprep.subr.mxu0 0.0
    %2317 = vmatpush1.msra.mxu0 0.0
    %2318 = vmatprep.subr.mxu0 0.0
    %2319 = vmatpush1.msra.mxu0 0.0
    %2320 = vmatprep.subr.mxu0 0.0
    %2321 = vmatpush1.msra.mxu0 0.0
    %2322 = vmatprep.subr.mxu0 0.0
    %2323 = vmatpush1.msra.mxu0 0.0
    %2324 = vmatprep.subr.mxu0 0.0
    %2325 = vmatpush1.msra.mxu0 0.0
    %2326 = vmatprep.subr.mxu0 0.0
    %2327 = vmatpush1.msra.mxu0 0.0
    %2328 = vmatprep.subr.mxu0 0.0
    %2329 = vmatpush1.msra.mxu0 0.0
    %2330 = vmatprep.subr.mxu0 0.0
    %2331 = vmatpush1.msra.mxu0 0.0
    %2332 = vmatprep.subr.mxu0 0.0
    %2333 = vmatpush1.msra.mxu0 0.0
    %2334 = vmatprep.mubr.f32.mxu0 0.0
    %2335 = vmatmul.mubr.f32.gmra.mrb[0].mxu0 %v2265
    %v2336 = vpop.f32.mrb[0].mxu0
    %v2337 = vadd.f32 %v2261, %v2336
    %v2338 = vpop.f32.mrb[0].mxu0
    %2339 = vmatprep.mubr.f32.mxu0 0.0
    %2340 = vmatmul.mubr.f32.gmra.mrb[0].mxu0 %v2268
    %v2341 = vpop.f32.mrb[0].mxu0
    %v2342 = vadd.f32 %v2261, %v2341
    %v2343 = vpop.f32.mrb[0].mxu0
    %2344 = vdwg.mxu0
    %v2345 = vadd.f32 %v2152, %v2337
    %v2346 = vadd.f32 %v2153, %v2342
    %v2347 = vsel %vm107, %v2345, 0.0
    %2348 = vadd.xlane.f32.xlu0 %v2347
    %v2349 = vpop.xlane.xlu0 %2348
    %v2350 = vsel %vm107, %v2346, 0.0
    %2351 = vadd.xlane.f32.xlu0 %v2350
    %v2352 = vpop.xlane.xlu0 %2351
    %v2353 = vmul.f32 %v2349, %v2115
    %v2354 = vmul.f32 %v2352, %v2115
    %v2355 = vsub.f32 %v2345, %v2353
    %v2356 = vsub.f32 %v2346, %v2354
    %v2357 = vmul.f32 %v2355, %v2355
    %v2358 = vmul.f32 %v2356, %v2356
    %v2359 = vsel %vm107, %v2357, 0.0
    %2360 = vadd.xlane.f32.xlu0 %v2359
    %v2361 = vpop.xlane.xlu0 %2360
    %v2362 = vsel %vm107, %v2358, 0.0
    %2363 = vadd.xlane.f32.xlu0 %v2362
    %v2364 = vpop.xlane.xlu0 %2363
    %v2365 = vmul.f32 %v2361, %v2115
    %v2366 = vmul.f32 %v2364, %v2115
    %v2367 = vadd.f32 %v2365, 1e-05
    %v2368 = vadd.f32 %v2366, 1e-05
    %v2369 = vrsqrt.pop %v2367
    %v2370 = vrsqrt.pop %v2368
    %v2371 = vmul.f32 %v2355, %v2369
    %v2372 = vmul.f32 %v2356, %v2370
    %v2373 = vld [vmem:[%s11] sm:$0x1]
    %v2375 = vlaneseq
    %v2376 = vshrl.u32 %v2375, 7
    %v2377 = vsub.s32 0, %v2376
    %v2378 = vrot.slane %v2373, %v2377
    %v2380 = vmul.f32 %v2371, %v2378
    %v2381 = vmul.f32 %v2372, %v2378
    %v2382 = vld [vmem:[%s12] sm:$0x1]
    %v2384 = vlaneseq
    %v2385 = vshrl.u32 %v2384, 7
    %v2386 = vsub.s32 0, %v2385
    %v2387 = vrot.slane %v2382, %v2386
    %v2389 = vadd.f32 %v2380, %v2387
    %v2390 = vadd.f32 %v2381, %v2387
    %2391 = vst.msk [vmem:[#allocation10] sm:$0xff] %vm107, %v2389
    %2392 = vst.msk [vmem:[#allocation10 + $0x8] sm:$0xff] %vm107, %v2390
    // Predicated region
    $region70: #{tpu_custom_call.1} parent=1 // pred_check
      _
    $region71: #{tpu_custom_call.1} parent=1 // pred_check_branch
      %2394 = sbr.rel (0) target = $region73
    $region72: #{tpu_custom_call.1} parent=1 // pred_region
      %s2396 = ssub.s32 256, 256
      %2397 = vsyncadd [#allocation4], %s2396
      %s2398 = sshll.u32 [#allocation10], 4
      %s2399 = int_to_ptr.vmem [resolvable:$true] %s2398
      %2404 = dma.vmem_to_hbm [thread:$0]  %s2399, 256, %s13, [#allocation4], 128, 128, 8
    $region73: #{tpu_custom_call.1} parent=1 // pred_fallthru
      _
    // Predicated region
    $region74: #{tpu_custom_call.1} parent=1 // pred_check
      _
    $region75: #{tpu_custom_call.1} parent=1 // pred_check_branch
      %2406 = sbr.rel (0) target = $region77
    $region76: #{tpu_custom_call.1} parent=1 // pred_region
      %2407 = dma.done [#allocation4], 256
    $region77: #{tpu_custom_call.1} parent=1 // pred_fallthru
      _
    %2408 = vsyncpa [#allocation3], 1
    %2409 = vsyncpa [#allocation6], 1
    %2410 = vsyncpa [#allocation9], 1
    %2411 = vsyncpa [#allocation4], 1

</llo_original>
